<compile_context>
chip_gen: v7x
topology: tpu7x:2x2x1
jax: 0.10.0
libtpu: 0.0.40
codegen_flags: <defaults>
</compile_context>

<pallas_src>
import functools

import jax
import jax.numpy as jnp
from jax.experimental import pallas as pl
from jax.experimental.pallas import tpu as pltpu


def _softmax_lastdim(x):
    # Exact softmax over the last dim (rows must sum to 1, like F.softmax).
    m = jnp.max(x, axis=-1, keepdims=True)
    e = jnp.exp(x - m)
    s = jnp.sum(e, axis=-1, keepdims=True)
    return e / s


def _co_attention_kernel(u_ref, i_ref, mt_ref, pu_ref, pi_ref, *, pooling):
    bb, Lu, D = u_ref.shape
    _, Li, _ = i_ref.shape

    u = u_ref[...]                       # (bb, Lu, D)  compute dtype (bf16)
    i = i_ref[...]                       # (bb, Li, D)
    Mt = mt_ref[...]                     # (D, D) == M^T, i.e. Mt[e, d] = M[d, e]

    # u @ M for the whole batch block as a batched MXU einsum.  M^T is
    # broadcast along the (leading, untiled) batch dim so the contraction is
    # over the last dim of both operands.
    Mt_b = jnp.broadcast_to(Mt, (bb, D, D))                    # (bb, e, d)
    uM = jnp.einsum("bld,bed->ble", u, Mt_b,
                    preferred_element_type=jnp.float32)        # (bb, Lu, D) f32

    if pooling == "max":
        # S computed once; both pooled scores are reductions of the same tile
        # (axis=2 is the lane reduce, axis=1 the sublane reduce).
        S = jnp.einsum("ble,bke->blk", uM.astype(u.dtype), i,
                       preferred_element_type=jnp.float32)     # (bb, Lu, Li)
        u_score = jnp.max(S, axis=2)      # (bb, Lu)  == S.max(2)[0]
        i_score = jnp.max(S, axis=1)      # (bb, Li)  == S.max(1)[0]
    else:
        # mean pooling folded into matvecs: S is never materialized.
        #   u_score[b,l] = sum_d uM[b,l,d] * mean_k i[b,k,d]   (== S.mean(2))
        #   i_score[b,k] = sum_d i[b,k,d]  * mean_l uM[b,l,d]  (== S.mean(1))
        i_f = i.astype(jnp.float32)
        i_mean = jnp.mean(i_f, axis=1)                          # (bb, D)
        uM_mean = jnp.mean(uM, axis=1)                          # (bb, D)
        u_score = jnp.sum(uM * i_mean[:, None, :], axis=2)      # (bb, Lu)
        i_score = jnp.sum(i_f * uM_mean[:, None, :], axis=2)    # (bb, Li)

    pu_ref[...] = _softmax_lastdim(u_score)   # (bb, Lu)
    pi_ref[...] = _softmax_lastdim(i_score)   # (bb, Li)


def co_attention(u_fea, i_fea, M, *, pooling="max", gumbel=False,
                 block_b=8, compute_dtype=jnp.bfloat16):
    """Pallas implementation of Co_Attention.forward (gumbel=False path)."""
    if gumbel:
        # TODO(synk): gumbel_softmax(hard=True) needs in-kernel Gumbel noise
        # (pltpu.prng_*) + straight-through estimator; softmax path only.
        raise NotImplementedError("gumbel=True not implemented")
    if pooling not in ("max", "mean"):
        raise ValueError(f"unknown pooling: {pooling}")

    B, Lu, D = u_fea.shape
    Bi, Li, Di = i_fea.shape
    assert B == Bi and D == Di and M.shape == (D, D)

    # Batch block: a multiple of 8 so the (bb, Lu)/(bb, Li) output blocks are
    # sublane-aligned; pad B up and slice the result back afterwards.
    bb = max(8, int(block_b))
    bb = ((bb + 7) // 8) * 8
    n_blocks = pl.cdiv(B, bb)
    B_pad = n_blocks * bb
    if B_pad != B:
        pad = ((0, B_pad - B), (0, 0), (0, 0))
        u_fea = jnp.pad(u_fea, pad)
        i_fea = jnp.pad(i_fea, pad)

    # bf16 operands on the MXU, f32 accumulation inside the kernel.  M is
    # transposed in the wrapper (free) so the kernel contracts on last dims.
    u_c = u_fea.astype(compute_dtype)
    i_c = i_fea.astype(compute_dtype)
    Mt_c = jnp.transpose(M).astype(compute_dtype)

    kernel = functools.partial(_co_attention_kernel, pooling=pooling)

    # TODO(synk): for large Lu/Li add a key-side (Li) grid axis with an online
    # max / sum-exp so S is only ever (Lu, Li_tile) in VMEM; whole-S per block
    # is fine at these sizes.
    pu, pi = pl.pallas_call(
        kernel,
        out_shape=(
            jax.ShapeDtypeStruct((B_pad, Lu), jnp.float32),
            jax.ShapeDtypeStruct((B_pad, Li), jnp.float32),
        ),
        grid=(n_blocks,),
        in_specs=[
            pl.BlockSpec((bb, Lu, D), lambda b: (b, 0, 0)),
            pl.BlockSpec((bb, Li, D), lambda b: (b, 0, 0)),
            pl.BlockSpec((D, D), lambda b: (0, 0)),
        ],
        out_specs=(
            pl.BlockSpec((bb, Lu), lambda b: (b, 0)),
            pl.BlockSpec((bb, Li), lambda b: (b, 0)),
        ),
        compiler_params=pltpu.CompilerParams(
            dimension_semantics=("parallel",)),
    )(u_c, i_c, Mt_c)

    # PyTorch returns (B, 1, Lu) / (B, 1, Li): do the unsqueeze(1) here so the
    # kernel writes lane-dense 2-D slabs.
    return pu[:B, None, :], pi[:B, None, :]


def _reference(u_fea, i_fea, M, pooling, compute_dtype=jnp.bfloat16):
    # Pure-JAX reference mirroring the kernel's bf16/f32 mixed precision.
    u = u_fea.astype(compute_dtype)
    i = i_fea.astype(compute_dtype)
    Mc = M.astype(compute_dtype)
    uM = jnp.einsum("bld,de->ble", u, Mc, preferred_element_type=jnp.float32)
    if pooling == "max":
        S = jnp.einsum("ble,bke->blk", uM.astype(compute_dtype), i,
                       preferred_element_type=jnp.float32)
        u_score = S.max(axis=2)
        i_score = S.max(axis=1)
    else:
        i_f = i.astype(jnp.float32)
        u_score = jnp.sum(uM * jnp.mean(i_f, axis=1)[:, None, :], axis=2)
        i_score = jnp.sum(i_f * jnp.mean(uM, axis=1)[:, None, :], axis=2)
    p_u = jax.nn.softmax(u_score, axis=1)
    p_i = jax.nn.softmax(i_score, axis=1)
    return p_u[:, None, :], p_i[:, None, :]


if __name__ == "__main__":
    # Small shapes consistent with the module: batch=16, Lu=8, Li=16, dim=32.
    # (block_b=8 -> 2 grid steps, exercising the batched-block path.)
    B, Lu, Li, D = 16, 8, 16, 32
    gumbel = False

    key = jax.random.PRNGKey(0)
    ku, ki, km, kwu, kbu, kwi, kbi = jax.random.split(key, 7)

    u_fea = jax.random.normal(ku, (B, Lu, D), dtype=jnp.float32)
    i_fea = jax.random.normal(ki, (B, Li, D), dtype=jnp.float32)

    # Parameter init matching reset_para (deterministic, synthetic):
    #   M: xavier_uniform_(gain=1) -> U(-sqrt(6/(D+D)), +sqrt(6/(D+D)))
    bound = (6.0 / (D + D)) ** 0.5
    M = jax.random.uniform(km, (D, D), dtype=jnp.float32,
                           minval=-bound, maxval=bound)
    # fc_u / fc_i params exist in the module but are unused by forward();
    # created here only for shape fidelity.
    fc_u_w = jax.random.uniform(kwu, (D, D), jnp.float32, -0.1, 0.1)
    fc_u_b = jax.random.uniform(kbu, (D,), jnp.float32, -0.1, 0.1)
    fc_i_w = jax.random.uniform(kwi, (D, D), jnp.float32, -0.1, 0.1)
    fc_i_b = jax.random.uniform(kbi, (D,), jnp.float32, -0.1, 0.1)

    for pooling in ("max", "mean"):
        p_u, p_i = co_attention(u_fea, i_fea, M, pooling=pooling,
                                gumbel=gumbel, block_b=8)
        jax.block_until_ready((p_u, p_i))

        ref_u, ref_i = _reference(u_fea, i_fea, M, pooling)
        assert p_u.shape == (B, 1, Lu) and p_i.shape == (B, 1, Li)
        assert jnp.allclose(jnp.sum(p_u, axis=-1), 1.0, atol=1e-3), pooling
        assert jnp.allclose(jnp.sum(p_i, axis=-1), 1.0, atol=1e-3), pooling
        assert jnp.allclose(p_u, ref_u, atol=5e-3, rtol=5e-3), pooling
        assert jnp.allclose(p_i, ref_i, atol=5e-3, rtol=5e-3), pooling

    print("KERNEL_OK")
</pallas_src>

<mosaic_0001>
module attributes {stable_mosaic.version = 11 : i64} {
  func.func @_co_attention_kernel(%arg0: i32, %arg1: memref<8x8x32xbf16, #tpu.memory_space<vmem>>, %arg2: memref<8x16x32xbf16, #tpu.memory_space<vmem>>, %arg3: memref<32x32xbf16, #tpu.memory_space<vmem>>, %arg4: memref<8x8xf32, #tpu.memory_space<vmem>>, %arg5: memref<8x16xf32, #tpu.memory_space<vmem>>) attributes {dimension_semantics = [#tpu.dimension_semantics<parallel>], iteration_bounds = array<i64: 2>, scalar_prefetch = 0 : i64, scratch_operands = 0 : i64, tpu.core_type = #tpu.core_type<tc>, window_params = [{transform_indices = @transform_0, window_bounds = array<i64: 8, 8, 32>}, {transform_indices = @transform_1, window_bounds = array<i64: 8, 16, 32>}, {pipeline_mode = #tpu.pipeline_mode<synchronous>, transform_indices = @transform_2, window_bounds = array<i64: 32, 32>}, {transform_indices = @transform_3, window_bounds = array<i64: 8, 8>}, {transform_indices = @transform_4, window_bounds = array<i64: 8, 16>}]} {
    %c0 = arith.constant 0 : index
    %c0_0 = arith.constant 0 : index
    %c0_1 = arith.constant 0 : index
    %0 = vector.load %arg1[%c0, %c0_0, %c0_1] : memref<8x8x32xbf16, #tpu.memory_space<vmem>>, vector<8x8x32xbf16>
    %c0_2 = arith.constant 0 : index
    %c0_3 = arith.constant 0 : index
    %c0_4 = arith.constant 0 : index
    %1 = vector.load %arg2[%c0_2, %c0_3, %c0_4] : memref<8x16x32xbf16, #tpu.memory_space<vmem>>, vector<8x16x32xbf16>
    %c0_5 = arith.constant 0 : index
    %c0_6 = arith.constant 0 : index
    %2 = vector.load %arg3[%c0_5, %c0_6] : memref<32x32xbf16, #tpu.memory_space<vmem>>, vector<32x32xbf16>
    %3 = vector.shape_cast %2 : vector<32x32xbf16> to vector<1x32x32xbf16>
    %4 = vector.broadcast %3 : vector<1x32x32xbf16> to vector<8x32x32xbf16>
    "tpu.trace_start"() <{level = 10 : i32, message = "bld,bed->ble"}> : () -> ()
    %cst = arith.constant dense<0.000000e+00> : vector<8x8x32xf32>
    %5 = tpu.matmul %0, %4, %cst {dimension_numbers = #tpu.dot_dimension_numbers<[2], [2], [1], [1], [0, 0, 0, 1, 1, 1], [0], [0]>} : vector<8x8x32xbf16>, vector<8x32x32xbf16>, vector<8x8x32xf32> -> vector<8x8x32xf32>
    "tpu.trace_stop"() : () -> ()
    %6 = arith.truncf %5 : vector<8x8x32xf32> to vector<8x8x32xbf16>
    "tpu.trace_start"() <{level = 10 : i32, message = "ble,bke->blk"}> : () -> ()
    %cst_7 = arith.constant dense<0.000000e+00> : vector<8x8x16xf32>
    %7 = tpu.matmul %6, %1, %cst_7 {dimension_numbers = #tpu.dot_dimension_numbers<[2], [2], [1], [1], [0, 0, 0, 1, 1, 1], [0], [0]>} : vector<8x8x32xbf16>, vector<8x16x32xbf16>, vector<8x8x16xf32> -> vector<8x8x16xf32>
    "tpu.trace_stop"() : () -> ()
    %cst_8 = arith.constant dense<0xFF800000> : vector<8x8xf32>
    %8 = vector.multi_reduction <maximumf>, %7, %cst_8 [2] : vector<8x8x16xf32> to vector<8x8xf32>
    %cst_9 = arith.constant dense<0xFF800000> : vector<8x16xf32>
    %9 = vector.multi_reduction <maximumf>, %7, %cst_9 [1] : vector<8x8x16xf32> to vector<8x16xf32>
    %cst_10 = arith.constant dense<0xFF800000> : vector<8xf32>
    %10 = vector.multi_reduction <maximumf>, %8, %cst_10 [1] : vector<8x8xf32> to vector<8xf32>
    %11 = vector.shape_cast %10 : vector<8xf32> to vector<8x1xf32>
    %12 = vector.broadcast %11 : vector<8x1xf32> to vector<8x8xf32>
    %13 = arith.subf %8, %12 : vector<8x8xf32>
    %14 = math.exp %13 : vector<8x8xf32>
    %cst_11 = arith.constant dense<0.000000e+00> : vector<8xf32>
    %15 = vector.multi_reduction <add>, %14, %cst_11 [1] : vector<8x8xf32> to vector<8xf32>
    %16 = vector.shape_cast %15 : vector<8xf32> to vector<8x1xf32>
    %17 = vector.broadcast %16 : vector<8x1xf32> to vector<8x8xf32>
    %18 = arith.divf %14, %17 : vector<8x8xf32>
    %c0_12 = arith.constant 0 : index
    %c0_13 = arith.constant 0 : index
    %19 = vector.load %arg4[%c0_12, %c0_13] : memref<8x8xf32, #tpu.memory_space<vmem>>, vector<8x8xf32>
    tpu.vector_store %arg4[%c0_12, %c0_13], %18 {strides = array<i32>} : memref<8x8xf32, #tpu.memory_space<vmem>>, vector<8x8xf32>,
    %cst_14 = arith.constant dense<0xFF800000> : vector<8xf32>
    %20 = vector.multi_reduction <maximumf>, %9, %cst_14 [1] : vector<8x16xf32> to vector<8xf32>
    %21 = vector.shape_cast %20 : vector<8xf32> to vector<8x1xf32>
    %22 = vector.broadcast %21 : vector<8x1xf32> to vector<8x16xf32>
    %23 = arith.subf %9, %22 : vector<8x16xf32>
    %24 = math.exp %23 : vector<8x16xf32>
    %cst_15 = arith.constant dense<0.000000e+00> : vector<8xf32>
    %25 = vector.multi_reduction <add>, %24, %cst_15 [1] : vector<8x16xf32> to vector<8xf32>
    %26 = vector.shape_cast %25 : vector<8xf32> to vector<8x1xf32>
    %27 = vector.broadcast %26 : vector<8x1xf32> to vector<8x16xf32>
    %28 = arith.divf %24, %27 : vector<8x16xf32>
    %c0_16 = arith.constant 0 : index
    %c0_17 = arith.constant 0 : index
    %29 = vector.load %arg5[%c0_16, %c0_17] : memref<8x16xf32, #tpu.memory_space<vmem>>, vector<8x16xf32>
    tpu.vector_store %arg5[%c0_16, %c0_17], %28 {strides = array<i32>} : memref<8x16xf32, #tpu.memory_space<vmem>>, vector<8x16xf32>,
    return
  }
  func.func @transform_0(%arg0: i32) -> (i32, i32, i32) {
    %c0_i32 = arith.constant 0 : i32
    %c0_i32_0 = arith.constant 0 : i32
    %c0_i32_1 = arith.constant 0 : i32
    return %arg0, %c0_i32, %c0_i32_0 : i32, i32, i32
  }
  func.func @transform_1(%arg0: i32) -> (i32, i32, i32) {
    %c0_i32 = arith.constant 0 : i32
    %c0_i32_0 = arith.constant 0 : i32
    %c0_i32_1 = arith.constant 0 : i32
    return %arg0, %c0_i32, %c0_i32_0 : i32, i32, i32
  }
  func.func @transform_2(%arg0: i32) -> (i32, i32) {
    %c0_i32 = arith.constant 0 : i32
    %c0_i32_0 = arith.constant 0 : i32
    %c0_i32_1 = arith.constant 0 : i32
    return %c0_i32, %c0_i32_0 : i32, i32
  }
  func.func @transform_3(%arg0: i32) -> (i32, i32) {
    %c0_i32 = arith.constant 0 : i32
    %c0_i32_0 = arith.constant 0 : i32
    return %arg0, %c0_i32 : i32, i32
  }
  func.func @transform_4(%arg0: i32) -> (i32, i32) {
    %c0_i32 = arith.constant 0 : i32
    %c0_i32_0 = arith.constant 0 : i32
    return %arg0, %c0_i32 : i32, i32
  }
}

</mosaic_0001>

<llo_original>
// kernel: tpu_custom_call.1
$region0: #{tpu_custom_call.1}
  #allocation0 [shape = 'u32[]', space=smem, size = 0x4, offset = 0x4, fixed_abs, tag = 'smem constant byte address 0x4 - core index']
  #allocation1 [shape = 'u32[144,128]{1,0:T(1,128)}', space=vmem, size = 0x12000, scoped, tag = 'internal scratch']
  %s0 = inlined_call_operand.hbm [shape: bf16[16,8,32], index: 0, kind: input, shape index: {}]
  %s1 = inlined_call_operand.hbm [shape: bf16[16,16,32], index: 1, kind: input, shape index: {}]
  %s2 = inlined_call_operand.hbm [shape: bf16[32,32], index: 2, kind: input, shape index: {}]
  %s3 = inlined_call_operand.vmem [shape: f32[16,8], index: 3, kind: output, shape index: {0}]
  %s4 = inlined_call_operand.hbm [shape: f32[16,16], index: 4, kind: output, shape index: {1}]
  %5 = xla_tuple %s3, %s4
  %s6 = sld [smem:[#allocation0]]
  $region65: #{tpu_custom_call.1} parent=0
    _
  %s8 = ssub.s32 1, %s6
  %s9 = scalar_select 0, %s8, %s6
  $region1: #{tpu_custom_call.1} parent=0
    #allocation2 [shape = 'u8[32768]{0}', space=vmem, size = 0x8000, scoped, tag = 'input window, operand 0']
    #allocation3 [shape = 's32[2]{0}', space=sflag, size = 0x8, scoped, tag = 'scoped memory for tpu_custom_call.1']
    #allocation4 [shape = 's32[2]{0}', space=sflag, size = 0x8, scoped, tag = 'scoped memory for tpu_custom_call.1']
    #allocation5 [shape = 'u8[65536]{0}', space=vmem, size = 0x10000, scoped, tag = 'input window, operand 1']
    #allocation6 [shape = 's32[2]{0}', space=sflag, size = 0x8, scoped, tag = 'scoped memory for tpu_custom_call.1']
    #allocation7 [shape = 'u8[8192]{0}', space=vmem, size = 0x2000, scoped, tag = 'input window, operand 2, single buffered']
    #allocation8 [shape = 'u8[8192]{0}', space=vmem, size = 0x2000, scoped, tag = 'output window, operand 1']
    %10 = vsyncpa [#allocation3], 0
    %s11 = scalar_lea.sflag [#allocation3], 1
    %12 = vsyncpa %s11, 0
    %13 = vsyncpa [#allocation6], 0
    %s14 = scalar_lea.sflag [#allocation6], 1
    %15 = vsyncpa %s14, 0
    %16 = vsyncpa [#allocation4], 0
    %s17 = scalar_lea.sflag [#allocation4], 1
    %18 = vsyncpa %s17, 0
    loop: start=0, step=1, limit=4
    $region2: #{tpu_custom_call.1} parent=1 // loop_pre_header
      _
    $region3: #{tpu_custom_call.1} parent=1 // loop_header
      %s20 = sphi 0, %s24
      %p21 = scmp.ge.s32.totalorder %s20, 4
      %s30 = sphi 0, %s32
      %s33 = sphi 0, %s30
      %s34 = sphi 0, %s33
      %s50 = sphi 0, %s34
      %s56 = sphi 0, %s58
      %s59 = sphi 0, %s56
      %s60 = sphi 0, %s59
      %s76 = sphi 0, %s60
      %s80 = sphi 0, %s80
      %s82 = sphi 0, %s80
      %s83 = sphi 0, %s82
      %s97 = sphi 0, %s83
      %s103 = sphi 0, %s105
      %s106 = sphi 0, %s103
      %s107 = sphi 0, %s106
      %s123 = sphi 0, %s107
      %s129 = sphi 0, %s131
      %s132 = sphi 0, %s129
      %s133 = sphi 0, %s132
      %s149 = sphi 0, %s133
    $region4: #{tpu_custom_call.1} parent=1 // loop_header_branch
      %23 = sbr.rel (%p21) target = $region8
    $region5: #{tpu_custom_call.1} parent=1 // loop_body
      %s25 = ssub.s32 %s20, 1
      %s26 = ssub.s32 %s20, 2
      %s27 = sadd.s32 %s20, 1
      %s28 = ssub.s32 %s20, %s27
      %p29 = scmp.eq.s32.totalorder %s28, 0
      %s31 = sadd.s32 %s30, 1
      %s32 = scalar_select %p29, %s30, %s31
      %p35 = pneg %p29
      %p36 = scmp.eq.s32.totalorder %s20, 1
      %p37 = por %p35, %p36
      %p38 = scmp.ne.s32.totalorder %s30, %s33
      %p39 = scmp.eq.s32.totalorder %s20, 0
      %p40 = por %p38, %p39
      %p41 = scmp.ne.s32.totalorder %s30, %s33
      %p42 = scmp.eq.s32.totalorder %s25, 1
      %p43 = por %p41, %p42
      %p44 = scmp.ne.s32.totalorder %s33, %s34
      %p45 = scmp.eq.s32.totalorder %s25, 0
      %p46 = por %p44, %p45
      %p47 = scmp.ne.s32.totalorder %s33, %s34
      %p48 = scmp.eq.s32.totalorder %s26, 1
      %p49 = por %p47, %p48
      %p51 = scmp.ne.s32.totalorder %s34, %s50
      %p52 = scmp.eq.s32.totalorder %s26, 0
      %p53 = por %p51, %p52
      %s54 = ssub.s32 %s20, %s27
      %p55 = scmp.eq.s32.totalorder %s54, 0
      %s57 = sadd.s32 %s56, 1
      %s58 = scalar_select %p55, %s56, %s57
      %p61 = pneg %p55
      %p62 = scmp.eq.s32.totalorder %s20, 1
      %p63 = por %p61, %p62
      %p64 = scmp.ne.s32.totalorder %s56, %s59
      %p65 = scmp.eq.s32.totalorder %s20, 0
      %p66 = por %p64, %p65
      %p67 = scmp.ne.s32.totalorder %s56, %s59
      %p68 = scmp.eq.s32.totalorder %s25, 1
      %p69 = por %p67, %p68
      %p70 = scmp.ne.s32.totalorder %s59, %s60
      %p71 = scmp.eq.s32.totalorder %s25, 0
      %p72 = por %p70, %p71
      %p73 = scmp.ne.s32.totalorder %s59, %s60
      %p74 = scmp.eq.s32.totalorder %s26, 1
      %p75 = por %p73, %p74
      %p77 = scmp.ne.s32.totalorder %s60, %s76
      %p78 = scmp.eq.s32.totalorder %s26, 0
      %p79 = por %p77, %p78
      %s81 = sadd.s32 %s80, 1
      %p84 = scmp.eq.s32.totalorder %s20, 1
      %p85 = scmp.ne.s32.totalorder %s80, %s82
      %p86 = scmp.eq.s32.totalorder %s20, 0
      %p87 = por %p85, %p86
      %p88 = scmp.ne.s32.totalorder %s80, %s82
      %p89 = scmp.eq.s32.totalorder %s25, 1
      %p90 = por %p88, %p89
      %p91 = scmp.ne.s32.totalorder %s82, %s83
      %p92 = scmp.eq.s32.totalorder %s25, 0
      %p93 = por %p91, %p92
      %p94 = scmp.ne.s32.totalorder %s82, %s83
      %p95 = scmp.eq.s32.totalorder %s26, 1
      %p96 = por %p94, %p95
      %p98 = scmp.ne.s32.totalorder %s83, %s97
      %p99 = scmp.eq.s32.totalorder %s26, 0
      %p100 = por %p98, %p99
      %s101 = ssub.s32 %s20, %s27
      %p102 = scmp.eq.s32.totalorder %s101, 0
      %s104 = sadd.s32 %s103, 1
      %s105 = scalar_select %p102, %s103, %s104
      %p108 = pneg %p102
      %p109 = scmp.eq.s32.totalorder %s20, 1
      %p110 = por %p108, %p109
      %p111 = scmp.ne.s32.totalorder %s103, %s106
      %p112 = scmp.eq.s32.totalorder %s20, 0
      %p113 = por %p111, %p112
      %p114 = scmp.ne.s32.totalorder %s103, %s106
      %p115 = scmp.eq.s32.totalorder %s25, 1
      %p116 = por %p114, %p115
      %p117 = scmp.ne.s32.totalorder %s106, %s107
      %p118 = scmp.eq.s32.totalorder %s25, 0
      %p119 = por %p117, %p118
      %p120 = scmp.ne.s32.totalorder %s106, %s107
      %p121 = scmp.eq.s32.totalorder %s26, 1
      %p122 = por %p120, %p121
      %p124 = scmp.ne.s32.totalorder %s107, %s123
      %p125 = scmp.eq.s32.totalorder %s26, 0
      %p126 = por %p124, %p125
      %s127 = ssub.s32 %s20, %s27
      %p128 = scmp.eq.s32.totalorder %s127, 0
      %s130 = sadd.s32 %s129, 1
      %s131 = scalar_select %p128, %s129, %s130
      %p134 = pneg %p128
      %p135 = scmp.eq.s32.totalorder %s20, 1
      %p136 = por %p134, %p135
      %p137 = scmp.ne.s32.totalorder %s129, %s132
      %p138 = scmp.eq.s32.totalorder %s20, 0
      %p139 = por %p137, %p138
      %p140 = scmp.ne.s32.totalorder %s129, %s132
      %p141 = scmp.eq.s32.totalorder %s25, 1
      %p142 = por %p140, %p141
      %p143 = scmp.ne.s32.totalorder %s132, %s133
      %p144 = scmp.eq.s32.totalorder %s25, 0
      %p145 = por %p143, %p144
      %p146 = scmp.ne.s32.totalorder %s132, %s133
      %p147 = scmp.eq.s32.totalorder %s26, 1
      %p148 = por %p146, %p147
      %p150 = scmp.ne.s32.totalorder %s133, %s149
      %p151 = scmp.eq.s32.totalorder %s26, 0
      %p152 = por %p150, %p151
      %p153 = scmp.le.s32.totalorder 1, %s20
      %p154 = scmp.lt.s32.totalorder %s20, 3
      %p155 = pnand %p153, %p154
      %p156 = pneg %p155
      // Predicated region
      $region9: #{tpu_custom_call.1} parent=5 // pred_check
        _
      $region10: #{tpu_custom_call.1} parent=5 // pred_check_branch
        %158 = sbr.rel (%p155) target = $region12
      $region11: #{tpu_custom_call.1} parent=5 // pred_region
        %s159 = ssub.s32 %s20, 1
        // Predicated region
        $region13: #{tpu_custom_call.1} parent=11 // pred_check
          %p160 = pneg %p93
        $region14: #{tpu_custom_call.1} parent=11 // pred_check_branch
          %162 = sbr.rel (%p160) target = $region16
        $region15: #{tpu_custom_call.1} parent=11 // pred_region
          %s164 = ssub.s32 256, 256
          %165 = vsyncadd [#allocation6], %s164
          %s166 = sshll.u32 [#allocation7], 4
          %s167 = int_to_ptr.vmem [resolvable:$true] %s166
          %172 = dma.hbm_to_vmem [thread:$0]  %s2, 256, %s167, [#allocation6], 64, 64, 4
        $region16: #{tpu_custom_call.1} parent=11 // pred_fallthru
          _
      $region12: #{tpu_custom_call.1} parent=5 // pred_fallthru
        _
      %p173 = scmp.lt.s32.totalorder %s20, 2
      // Predicated region
      $region17: #{tpu_custom_call.1} parent=5 // pred_check
        %p174 = pneg %p173
      $region18: #{tpu_custom_call.1} parent=5 // pred_check_branch
        %176 = sbr.rel (%p174) target = $region20
      $region19: #{tpu_custom_call.1} parent=5 // pred_region
        // Predicated region
        $region21: #{tpu_custom_call.1} parent=19 // pred_check
          %p177 = pneg %p40
        $region22: #{tpu_custom_call.1} parent=19 // pred_check_branch
          %179 = sbr.rel (%p177) target = $region24
        $region23: #{tpu_custom_call.1} parent=19 // pred_region
          %s180 = sand.u32 %s30, 1
          %s181 = scalar_lea.sflag [#allocation3], %s180
          %s182 = sand.u32 %s30, 1
          %s183 = smul.addr %s182, 32
          %s184 = scalar_lea.vmem [#allocation2], %s183
          %s185 = smul.u32 8, %s20
          %s187 = ssub.s32 512, 512
          %188 = vsyncadd %s181, %s187
          %s189 = smul.addr %s185, 64
          %s190 = scalar_lea.hbm %s0, %s189
          %s191 = sshll.u32 %s184, 4
          %s192 = int_to_ptr.vmem [resolvable:$true] %s191
          %197 = dma.hbm_to_vmem [thread:$0]  %s190, 512, %s192, %s181, 64, 64, 4
        $region24: #{tpu_custom_call.1} parent=19 // pred_fallthru
          _
        // Predicated region
        $region25: #{tpu_custom_call.1} parent=19 // pred_check
          %p198 = pneg %p66
        $region26: #{tpu_custom_call.1} parent=19 // pred_check_branch
          %200 = sbr.rel (%p198) target = $region28
        $region27: #{tpu_custom_call.1} parent=19 // pred_region
          %s201 = sand.u32 %s20, 1
          %s202 = scalar_lea.sflag [#allocation6], %s201
          %s203 = sand.u32 %s56, 1
          %s204 = smul.addr %s203, 64
          %s205 = scalar_lea.vmem [#allocation5], %s204
          %s206 = smul.u32 8, %s20
          %s208 = ssub.s32 1024, 1024
          %209 = vsyncadd %s202, %s208
          %s210 = smul.addr %s206, 2
          %s211 = smul.addr %s210, 64
          %s212 = scalar_lea.hbm %s1, %s211
          %s213 = sshll.u32 %s205, 4
          %s214 = int_to_ptr.vmem [resolvable:$true] %s213
          %219 = dma.hbm_to_vmem [thread:$0]  %s212, 1024, %s214, %s202, 64, 64, 4
        $region28: #{tpu_custom_call.1} parent=19 // pred_fallthru
          _
      $region20: #{tpu_custom_call.1} parent=5 // pred_fallthru
        _
      %p220 = scmp.le.s32.totalorder 1, %s20
      %p221 = scmp.lt.s32.totalorder %s20, 3
      %p222 = pnand %p220, %p221
      %p223 = pneg %p222
      // Predicated region
      $region29: #{tpu_custom_call.1} parent=5 // pred_check
        _
      $region30: #{tpu_custom_call.1} parent=5 // pred_check_branch
        %225 = sbr.rel (%p222) target = $region32
      $region31: #{tpu_custom_call.1} parent=5 // pred_region
        %s226 = ssub.s32 %s20, 1
        %s227 = sand.u32 %s33, 1
        %s228 = scalar_lea.sflag [#allocation3], %s227
        %s229 = sand.u32 %s33, 1
        %s230 = smul.addr %s229, 32
        %s231 = scalar_lea.vmem [#allocation2], %s230
        // Predicated region
        $region33: #{tpu_custom_call.1} parent=31 // pred_check
          %p232 = pneg %p46
        $region34: #{tpu_custom_call.1} parent=31 // pred_check_branch
          %234 = sbr.rel (%p232) target = $region36
        $region35: #{tpu_custom_call.1} parent=31 // pred_region
          %235 = dma.done %s228, 512
        $region36: #{tpu_custom_call.1} parent=31 // pred_fallthru
          _
        %s236 = sand.u32 %s25, 1
        %s237 = scalar_lea.sflag [#allocation6], %s236
        %s238 = sand.u32 %s59, 1
        %s239 = smul.addr %s238, 64
        %s240 = scalar_lea.vmem [#allocation5], %s239
        // Predicated region
        $region37: #{tpu_custom_call.1} parent=31 // pred_check
          %p241 = pneg %p72
        $region38: #{tpu_custom_call.1} parent=31 // pred_check_branch
          %243 = sbr.rel (%p241) target = $region40
        $region39: #{tpu_custom_call.1} parent=31 // pred_region
          %244 = dma.done %s237, 1024
        $region40: #{tpu_custom_call.1} parent=31 // pred_fallthru
          _
        // Predicated region
        $region41: #{tpu_custom_call.1} parent=31 // pred_check
          %p245 = pneg %p93
        $region42: #{tpu_custom_call.1} parent=31 // pred_check_branch
          %247 = sbr.rel (%p245) target = $region44
        $region43: #{tpu_custom_call.1} parent=31 // pred_region
          %248 = dma.done [#allocation6], 256
        $region44: #{tpu_custom_call.1} parent=31 // pred_fallthru
          _
        %s249 = sand.u32 %s33, 1
        %s250 = scalar_lea.sflag [#allocation3], %s249
        %s251 = sand.u32 %s33, 1
        %s252 = smul.addr %s251, 32
        %s253 = scalar_lea.vmem [#allocation2], %s252
        %p254 = pneg %p46
        %p255 = pneg %p43
        %s256 = sand.u32 %s25, 1
        %s257 = scalar_lea.sflag [#allocation6], %s256
        %s258 = sand.u32 %s59, 1
        %s259 = smul.addr %s258, 64
        %s260 = scalar_lea.vmem [#allocation5], %s259
        %p261 = pneg %p72
        %p262 = pneg %p69
        %p263 = pneg %p93
        %p264 = pneg %p90
        %p265 = pneg %p119
        %p266 = pneg %p116
        %p267 = scmp.lt.s32.totalorder %s25, 1
        %s268 = scalar_select %p267, %s25, 1
        %s269 = smul.addr %s268, 8
        %s270 = scalar_lea.vmem %s3, %s269
        %p271 = pneg %p145
        %p272 = pneg %p142
        %s273 = sand.u32 %s132, 1
        %s274 = scalar_lea.sflag [#allocation4], %s273
        %s275 = sand.u32 %s132, 1
        %s276 = smul.addr %s275, 8
        %s277 = scalar_lea.vmem [#allocation8], %s276
        %s278 = smul.u32 8, %s25
        %s279 = smul.u32 8, %s25
        %p280 = scmp.lt.s32.totalorder %s25, 1
        %s281 = scalar_select %p280, %s25, 1
        %s282 = smul.addr %s281, 8
        %s283 = scalar_lea.vmem %s3, %s282
        %v285 = vld [vmem:[%s231] sm:$0xf]
        %v286 = vld [vmem:[%s231 + $0x4] sm:$0xf]
        %v287 = vld [vmem:[%s231 + $0x8] sm:$0xf]
        %v288 = vld [vmem:[%s231 + $0xc] sm:$0xf]
        %v289 = vld [vmem:[%s231 + $0x10] sm:$0xf]
        %v290 = vld [vmem:[%s231 + $0x14] sm:$0xf]
        %v291 = vld [vmem:[%s231 + $0x18] sm:$0xf]
        %v292 = vld [vmem:[%s231 + $0x1c] sm:$0xf]
        %v293 = vld [vmem:[%s240] sm:$0xf]
        %v294 = vld [vmem:[%s240 + $0x4] sm:$0xf]
        %v295 = vld [vmem:[%s240 + $0x8] sm:$0xf]
        %v296 = vld [vmem:[%s240 + $0xc] sm:$0xf]
        %v297 = vld [vmem:[%s240 + $0x10] sm:$0xf]
        %v298 = vld [vmem:[%s240 + $0x14] sm:$0xf]
        %v299 = vld [vmem:[%s240 + $0x18] sm:$0xf]
        %v300 = vld [vmem:[%s240 + $0x1c] sm:$0xf]
        %v301 = vld [vmem:[%s240 + $0x20] sm:$0xf]
        %v302 = vld [vmem:[%s240 + $0x24] sm:$0xf]
        %v303 = vld [vmem:[%s240 + $0x28] sm:$0xf]
        %v304 = vld [vmem:[%s240 + $0x2c] sm:$0xf]
        %v305 = vld [vmem:[%s240 + $0x30] sm:$0xf]
        %v306 = vld [vmem:[%s240 + $0x34] sm:$0xf]
        %v307 = vld [vmem:[%s240 + $0x38] sm:$0xf]
        %v308 = vld [vmem:[%s240 + $0x3c] sm:$0xf]
        %v309 = vld [vmem:[#allocation7] sm:$0xf]
        %v310 = vld [vmem:[#allocation7 + $0x4] sm:$0xf]
        %v311 = vld [vmem:[#allocation7 + $0x8] sm:$0xf]
        %v312 = vld [vmem:[#allocation7 + $0xc] sm:$0xf]
        %v317 = vunpack.c.l.b16 %v309
        %v318 = vunpack.c.l.b16 %v310
        %v319 = vunpack.c.l.b16 %v311
        %v320 = vunpack.c.l.b16 %v312
        %v321 = vpack.c.b16 %v318, %v317
        %v322 = vpack.c.b16 %v320, %v319
        %vm323 = vcmask 261120
        %v325 = vsel %vm323, %v285, 0
        %v328 = vsel %vm323, %v321, 0
        %v331 = vsel %vm323, %v322, 0
        %333 = vmatprep.subr.bf16.mxu0 0
        %334 = vmatpush1.bf16.xpose.msra.mxu0 %v328
        %335 = vmatprep.subr.bf16.mxu0 0
        %336 = vmatpush1.bf16.xpose.msra.mxu0 %v331
        %337 = vmatprep.subr.bf16.mxu0 0
        %338 = vmatpush1.bf16.xpose.msra.mxu0 0
        %339 = vmatprep.subr.bf16.mxu0 0
        %340 = vmatpush1.bf16.xpose.msra.mxu0 0
        %341 = vmatprep.subr.bf16.mxu0 0
        %342 = vmatpush1.bf16.xpose.msra.mxu0 0
        %343 = vmatprep.subr.bf16.mxu0 0
        %344 = vmatpush1.bf16.xpose.msra.mxu0 0
        %345 = vmatprep.subr.bf16.mxu0 0
        %346 = vmatpush1.bf16.xpose.msra.mxu0 0
        %347 = vmatprep.subr.bf16.mxu0 0
        %348 = vmatpush1.bf16.xpose.msra.mxu0 0
        %349 = vmatprep.subr.bf16.mxu0 0
        %350 = vmatpush1.bf16.xpose.msra.mxu0 0
        %351 = vmatprep.subr.bf16.mxu0 0
        %352 = vmatpush1.bf16.xpose.msra.mxu0 0
        %353 = vmatprep.subr.bf16.mxu0 0
        %354 = vmatpush1.bf16.xpose.msra.mxu0 0
        %355 = vmatprep.subr.bf16.mxu0 0
        %356 = vmatpush1.bf16.xpose.msra.mxu0 0
        %357 = vmatprep.subr.bf16.mxu0 0
        %358 = vmatpush1.bf16.xpose.msra.mxu0 0
        %359 = vmatprep.subr.bf16.mxu0 0
        %360 = vmatpush1.bf16.xpose.msra.mxu0 0
        %361 = vmatprep.subr.bf16.mxu0 0
        %362 = vmatpush1.bf16.xpose.msra.mxu0 0
        %363 = vmatprep.subr.bf16.mxu0 0
        %364 = vmatpush1.bf16.xpose.msra.mxu0 0
        %365 = vmatprep.mubr.bf16.mxu0 0
        %366 = vmatmul.mubr.bf16.gmra.mrb[0].mxu0 %v325
        %v367 = vpop.f32.mrb[0].mxu0
        %v368 = vadd.f32 0.0, %v367
        %v369 = vpop.f32.mrb[0].mxu0
        %v370 = vpop.f32.mrb[0].mxu0
        %v371 = vpop.f32.mrb[0].mxu0
        %372 = vdwg.mxu0
        %v374 = vsel %vm323, %v286, 0
        %376 = vmatprep.subr.bf16.mxu0 0
        %377 = vmatpush1.bf16.xpose.msra.mxu0 %v328
        %378 = vmatprep.subr.bf16.mxu0 0
        %379 = vmatpush1.bf16.xpose.msra.mxu0 %v331
        %380 = vmatprep.subr.bf16.mxu0 0
        %381 = vmatpush1.bf16.xpose.msra.mxu0 0
        %382 = vmatprep.subr.bf16.mxu0 0
        %383 = vmatpush1.bf16.xpose.msra.mxu0 0
        %384 = vmatprep.subr.bf16.mxu0 0
        %385 = vmatpush1.bf16.xpose.msra.mxu0 0
        %386 = vmatprep.subr.bf16.mxu0 0
        %387 = vmatpush1.bf16.xpose.msra.mxu0 0
        %388 = vmatprep.subr.bf16.mxu0 0
        %389 = vmatpush1.bf16.xpose.msra.mxu0 0
        %390 = vmatprep.subr.bf16.mxu0 0
        %391 = vmatpush1.bf16.xpose.msra.mxu0 0
        %392 = vmatprep.subr.bf16.mxu0 0
        %393 = vmatpush1.bf16.xpose.msra.mxu0 0
        %394 = vmatprep.subr.bf16.mxu0 0
        %395 = vmatpush1.bf16.xpose.msra.mxu0 0
        %396 = vmatprep.subr.bf16.mxu0 0
        %397 = vmatpush1.bf16.xpose.msra.mxu0 0
        %398 = vmatprep.subr.bf16.mxu0 0
        %399 = vmatpush1.bf16.xpose.msra.mxu0 0
        %400 = vmatprep.subr.bf16.mxu0 0
        %401 = vmatpush1.bf16.xpose.msra.mxu0 0
        %402 = vmatprep.subr.bf16.mxu0 0
        %403 = vmatpush1.bf16.xpose.msra.mxu0 0
        %404 = vmatprep.subr.bf16.mxu0 0
        %405 = vmatpush1.bf16.xpose.msra.mxu0 0
        %406 = vmatprep.subr.bf16.mxu0 0
        %407 = vmatpush1.bf16.xpose.msra.mxu0 0
        %408 = vmatprep.mubr.bf16.mxu0 0
        %409 = vmatmul.mubr.bf16.gmra.mrb[0].mxu0 %v374
        %v410 = vpop.f32.mrb[0].mxu0
        %v411 = vadd.f32 0.0, %v410
        %v412 = vpop.f32.mrb[0].mxu0
        %v413 = vpop.f32.mrb[0].mxu0
        %v414 = vpop.f32.mrb[0].mxu0
        %415 = vdwg.mxu0
        %v417 = vsel %vm323, %v287, 0
        %419 = vmatprep.subr.bf16.mxu0 0
        %420 = vmatpush1.bf16.xpose.msra.mxu0 %v328
        %421 = vmatprep.subr.bf16.mxu0 0
        %422 = vmatpush1.bf16.xpose.msra.mxu0 %v331
        %423 = vmatprep.subr.bf16.mxu0 0
        %424 = vmatpush1.bf16.xpose.msra.mxu0 0
        %425 = vmatprep.subr.bf16.mxu0 0
        %426 = vmatpush1.bf16.xpose.msra.mxu0 0
        %427 = vmatprep.subr.bf16.mxu0 0
        %428 = vmatpush1.bf16.xpose.msra.mxu0 0
        %429 = vmatprep.subr.bf16.mxu0 0
        %430 = vmatpush1.bf16.xpose.msra.mxu0 0
        %431 = vmatprep.subr.bf16.mxu0 0
        %432 = vmatpush1.bf16.xpose.msra.mxu0 0
        %433 = vmatprep.subr.bf16.mxu0 0
        %434 = vmatpush1.bf16.xpose.msra.mxu0 0
        %435 = vmatprep.subr.bf16.mxu0 0
        %436 = vmatpush1.bf16.xpose.msra.mxu0 0
        %437 = vmatprep.subr.bf16.mxu0 0
        %438 = vmatpush1.bf16.xpose.msra.mxu0 0
        %439 = vmatprep.subr.bf16.mxu0 0
        %440 = vmatpush1.bf16.xpose.msra.mxu0 0
        %441 = vmatprep.subr.bf16.mxu0 0
        %442 = vmatpush1.bf16.xpose.msra.mxu0 0
        %443 = vmatprep.subr.bf16.mxu0 0
        %444 = vmatpush1.bf16.xpose.msra.mxu0 0
        %445 = vmatprep.subr.bf16.mxu0 0
        %446 = vmatpush1.bf16.xpose.msra.mxu0 0
        %447 = vmatprep.subr.bf16.mxu0 0
        %448 = vmatpush1.bf16.xpose.msra.mxu0 0
        %449 = vmatprep.subr.bf16.mxu0 0
        %450 = vmatpush1.bf16.xpose.msra.mxu0 0
        %451 = vmatprep.mubr.bf16.mxu0 0
        %452 = vmatmul.mubr.bf16.gmra.mrb[0].mxu0 %v417
        %v453 = vpop.f32.mrb[0].mxu0
        %v454 = vadd.f32 0.0, %v453
        %v455 = vpop.f32.mrb[0].mxu0
        %v456 = vpop.f32.mrb[0].mxu0
        %v457 = vpop.f32.mrb[0].mxu0
        %458 = vdwg.mxu0
        %v460 = vsel %vm323, %v288, 0
        %462 = vmatprep.subr.bf16.mxu0 0
        %463 = vmatpush1.bf16.xpose.msra.mxu0 %v328
        %464 = vmatprep.subr.bf16.mxu0 0
        %465 = vmatpush1.bf16.xpose.msra.mxu0 %v331
        %466 = vmatprep.subr.bf16.mxu0 0
        %467 = vmatpush1.bf16.xpose.msra.mxu0 0
        %468 = vmatprep.subr.bf16.mxu0 0
        %469 = vmatpush1.bf16.xpose.msra.mxu0 0
        %470 = vmatprep.subr.bf16.mxu0 0
        %471 = vmatpush1.bf16.xpose.msra.mxu0 0
        %472 = vmatprep.subr.bf16.mxu0 0
        %473 = vmatpush1.bf16.xpose.msra.mxu0 0
        %474 = vmatprep.subr.bf16.mxu0 0
        %475 = vmatpush1.bf16.xpose.msra.mxu0 0
        %476 = vmatprep.subr.bf16.mxu0 0
        %477 = vmatpush1.bf16.xpose.msra.mxu0 0
        %478 = vmatprep.subr.bf16.mxu0 0
        %479 = vmatpush1.bf16.xpose.msra.mxu0 0
        %480 = vmatprep.subr.bf16.mxu0 0
        %481 = vmatpush1.bf16.xpose.msra.mxu0 0
        %482 = vmatprep.subr.bf16.mxu0 0
        %483 = vmatpush1.bf16.xpose.msra.mxu0 0
        %484 = vmatprep.subr.bf16.mxu0 0
        %485 = vmatpush1.bf16.xpose.msra.mxu0 0
        %486 = vmatprep.subr.bf16.mxu0 0
        %487 = vmatpush1.bf16.xpose.msra.mxu0 0
        %488 = vmatprep.subr.bf16.mxu0 0
        %489 = vmatpush1.bf16.xpose.msra.mxu0 0
        %490 = vmatprep.subr.bf16.mxu0 0
        %491 = vmatpush1.bf16.xpose.msra.mxu0 0
        %492 = vmatprep.subr.bf16.mxu0 0
        %493 = vmatpush1.bf16.xpose.msra.mxu0 0
        %494 = vmatprep.mubr.bf16.mxu0 0
        %495 = vmatmul.mubr.bf16.gmra.mrb[0].mxu0 %v460
        %v496 = vpop.f32.mrb[0].mxu0
        %v497 = vadd.f32 0.0, %v496
        %v498 = vpop.f32.mrb[0].mxu0
        %v499 = vpop.f32.mrb[0].mxu0
        %v500 = vpop.f32.mrb[0].mxu0
        %501 = vdwg.mxu0
        %v503 = vsel %vm323, %v289, 0
        %505 = vmatprep.subr.bf16.mxu0 0
        %506 = vmatpush1.bf16.xpose.msra.mxu0 %v328
        %507 = vmatprep.subr.bf16.mxu0 0
        %508 = vmatpush1.bf16.xpose.msra.mxu0 %v331
        %509 = vmatprep.subr.bf16.mxu0 0
        %510 = vmatpush1.bf16.xpose.msra.mxu0 0
        %511 = vmatprep.subr.bf16.mxu0 0
        %512 = vmatpush1.bf16.xpose.msra.mxu0 0
        %513 = vmatprep.subr.bf16.mxu0 0
        %514 = vmatpush1.bf16.xpose.msra.mxu0 0
        %515 = vmatprep.subr.bf16.mxu0 0
        %516 = vmatpush1.bf16.xpose.msra.mxu0 0
        %517 = vmatprep.subr.bf16.mxu0 0
        %518 = vmatpush1.bf16.xpose.msra.mxu0 0
        %519 = vmatprep.subr.bf16.mxu0 0
        %520 = vmatpush1.bf16.xpose.msra.mxu0 0
        %521 = vmatprep.subr.bf16.mxu0 0
        %522 = vmatpush1.bf16.xpose.msra.mxu0 0
        %523 = vmatprep.subr.bf16.mxu0 0
        %524 = vmatpush1.bf16.xpose.msra.mxu0 0
        %525 = vmatprep.subr.bf16.mxu0 0
        %526 = vmatpush1.bf16.xpose.msra.mxu0 0
        %527 = vmatprep.subr.bf16.mxu0 0
        %528 = vmatpush1.bf16.xpose.msra.mxu0 0
        %529 = vmatprep.subr.bf16.mxu0 0
        %530 = vmatpush1.bf16.xpose.msra.mxu0 0
        %531 = vmatprep.subr.bf16.mxu0 0
        %532 = vmatpush1.bf16.xpose.msra.mxu0 0
        %533 = vmatprep.subr.bf16.mxu0 0
        %534 = vmatpush1.bf16.xpose.msra.mxu0 0
        %535 = vmatprep.subr.bf16.mxu0 0
        %536 = vmatpush1.bf16.xpose.msra.mxu0 0
        %537 = vmatprep.mubr.bf16.mxu0 0
        %538 = vmatmul.mubr.bf16.gmra.mrb[0].mxu0 %v503
        %v539 = vpop.f32.mrb[0].mxu0
        %v540 = vadd.f32 0.0, %v539
        %v541 = vpop.f32.mrb[0].mxu0
        %v542 = vpop.f32.mrb[0].mxu0
        %v543 = vpop.f32.mrb[0].mxu0
        %544 = vdwg.mxu0
        %v546 = vsel %vm323, %v290, 0
        %548 = vmatprep.subr.bf16.mxu0 0
        %549 = vmatpush1.bf16.xpose.msra.mxu0 %v328
        %550 = vmatprep.subr.bf16.mxu0 0
        %551 = vmatpush1.bf16.xpose.msra.mxu0 %v331
        %552 = vmatprep.subr.bf16.mxu0 0
        %553 = vmatpush1.bf16.xpose.msra.mxu0 0
        %554 = vmatprep.subr.bf16.mxu0 0
        %555 = vmatpush1.bf16.xpose.msra.mxu0 0
        %556 = vmatprep.subr.bf16.mxu0 0
        %557 = vmatpush1.bf16.xpose.msra.mxu0 0
        %558 = vmatprep.subr.bf16.mxu0 0
        %559 = vmatpush1.bf16.xpose.msra.mxu0 0
        %560 = vmatprep.subr.bf16.mxu0 0
        %561 = vmatpush1.bf16.xpose.msra.mxu0 0
        %562 = vmatprep.subr.bf16.mxu0 0
        %563 = vmatpush1.bf16.xpose.msra.mxu0 0
        %564 = vmatprep.subr.bf16.mxu0 0
        %565 = vmatpush1.bf16.xpose.msra.mxu0 0
        %566 = vmatprep.subr.bf16.mxu0 0
        %567 = vmatpush1.bf16.xpose.msra.mxu0 0
        %568 = vmatprep.subr.bf16.mxu0 0
        %569 = vmatpush1.bf16.xpose.msra.mxu0 0
        %570 = vmatprep.subr.bf16.mxu0 0
        %571 = vmatpush1.bf16.xpose.msra.mxu0 0
        %572 = vmatprep.subr.bf16.mxu0 0
        %573 = vmatpush1.bf16.xpose.msra.mxu0 0
        %574 = vmatprep.subr.bf16.mxu0 0
        %575 = vmatpush1.bf16.xpose.msra.mxu0 0
        %576 = vmatprep.subr.bf16.mxu0 0
        %577 = vmatpush1.bf16.xpose.msra.mxu0 0
        %578 = vmatprep.subr.bf16.mxu0 0
        %579 = vmatpush1.bf16.xpose.msra.mxu0 0
        %580 = vmatprep.mubr.bf16.mxu0 0
        %581 = vmatmul.mubr.bf16.gmra.mrb[0].mxu0 %v546
        %v582 = vpop.f32.mrb[0].mxu0
        %v583 = vadd.f32 0.0, %v582
        %v584 = vpop.f32.mrb[0].mxu0
        %v585 = vpop.f32.mrb[0].mxu0
        %v586 = vpop.f32.mrb[0].mxu0
        %587 = vdwg.mxu0
        %v589 = vsel %vm323, %v291, 0
        %591 = vmatprep.subr.bf16.mxu0 0
        %592 = vmatpush1.bf16.xpose.msra.mxu0 %v328
        %593 = vmatprep.subr.bf16.mxu0 0
        %594 = vmatpush1.bf16.xpose.msra.mxu0 %v331
        %595 = vmatprep.subr.bf16.mxu0 0
        %596 = vmatpush1.bf16.xpose.msra.mxu0 0
        %597 = vmatprep.subr.bf16.mxu0 0
        %598 = vmatpush1.bf16.xpose.msra.mxu0 0
        %599 = vmatprep.subr.bf16.mxu0 0
        %600 = vmatpush1.bf16.xpose.msra.mxu0 0
        %601 = vmatprep.subr.bf16.mxu0 0
        %602 = vmatpush1.bf16.xpose.msra.mxu0 0
        %603 = vmatprep.subr.bf16.mxu0 0
        %604 = vmatpush1.bf16.xpose.msra.mxu0 0
        %605 = vmatprep.subr.bf16.mxu0 0
        %606 = vmatpush1.bf16.xpose.msra.mxu0 0
        %607 = vmatprep.subr.bf16.mxu0 0
        %608 = vmatpush1.bf16.xpose.msra.mxu0 0
        %609 = vmatprep.subr.bf16.mxu0 0
        %610 = vmatpush1.bf16.xpose.msra.mxu0 0
        %611 = vmatprep.subr.bf16.mxu0 0
        %612 = vmatpush1.bf16.xpose.msra.mxu0 0
        %613 = vmatprep.subr.bf16.mxu0 0
        %614 = vmatpush1.bf16.xpose.msra.mxu0 0
        %615 = vmatprep.subr.bf16.mxu0 0
        %616 = vmatpush1.bf16.xpose.msra.mxu0 0
        %617 = vmatprep.subr.bf16.mxu0 0
        %618 = vmatpush1.bf16.xpose.msra.mxu0 0
        %619 = vmatprep.subr.bf16.mxu0 0
        %620 = vmatpush1.bf16.xpose.msra.mxu0 0
        %621 = vmatprep.subr.bf16.mxu0 0
        %622 = vmatpush1.bf16.xpose.msra.mxu0 0
        %623 = vmatprep.mubr.bf16.mxu0 0
        %624 = vmatmul.mubr.bf16.gmra.mrb[0].mxu0 %v589
        %v625 = vpop.f32.mrb[0].mxu0
        %v626 = vadd.f32 0.0, %v625
        %v627 = vpop.f32.mrb[0].mxu0
        %v628 = vpop.f32.mrb[0].mxu0
        %v629 = vpop.f32.mrb[0].mxu0
        %630 = vdwg.mxu0
        %v632 = vsel %vm323, %v292, 0
        %634 = vmatprep.subr.bf16.mxu0 0
        %635 = vmatpush1.bf16.xpose.msra.mxu0 %v328
        %636 = vmatprep.subr.bf16.mxu0 0
        %637 = vmatpush1.bf16.xpose.msra.mxu0 %v331
        %638 = vmatprep.subr.bf16.mxu0 0
        %639 = vmatpush1.bf16.xpose.msra.mxu0 0
        %640 = vmatprep.subr.bf16.mxu0 0
        %641 = vmatpush1.bf16.xpose.msra.mxu0 0
        %642 = vmatprep.subr.bf16.mxu0 0
        %643 = vmatpush1.bf16.xpose.msra.mxu0 0
        %644 = vmatprep.subr.bf16.mxu0 0
        %645 = vmatpush1.bf16.xpose.msra.mxu0 0
        %646 = vmatprep.subr.bf16.mxu0 0
        %647 = vmatpush1.bf16.xpose.msra.mxu0 0
        %648 = vmatprep.subr.bf16.mxu0 0
        %649 = vmatpush1.bf16.xpose.msra.mxu0 0
        %650 = vmatprep.subr.bf16.mxu0 0
        %651 = vmatpush1.bf16.xpose.msra.mxu0 0
        %652 = vmatprep.subr.bf16.mxu0 0
        %653 = vmatpush1.bf16.xpose.msra.mxu0 0
        %654 = vmatprep.subr.bf16.mxu0 0
        %655 = vmatpush1.bf16.xpose.msra.mxu0 0
        %656 = vmatprep.subr.bf16.mxu0 0
        %657 = vmatpush1.bf16.xpose.msra.mxu0 0
        %658 = vmatprep.subr.bf16.mxu0 0
        %659 = vmatpush1.bf16.xpose.msra.mxu0 0
        %660 = vmatprep.subr.bf16.mxu0 0
        %661 = vmatpush1.bf16.xpose.msra.mxu0 0
        %662 = vmatprep.subr.bf16.mxu0 0
        %663 = vmatpush1.bf16.xpose.msra.mxu0 0
        %664 = vmatprep.subr.bf16.mxu0 0
        %665 = vmatpush1.bf16.xpose.msra.mxu0 0
        %666 = vmatprep.mubr.bf16.mxu0 0
        %667 = vmatmul.mubr.bf16.gmra.mrb[0].mxu0 %v632
        %v668 = vpop.f32.mrb[0].mxu0
        %v669 = vadd.f32 0.0, %v668
        %v670 = vpop.f32.mrb[0].mxu0
        %v671 = vpop.f32.mrb[0].mxu0
        %v672 = vpop.f32.mrb[0].mxu0
        %673 = vdwg.mxu0
        %v674 = vpack.c.bf16 %v368, %v368
        %v675 = vpack.c.bf16 %v411, %v411
        %v676 = vpack.c.bf16 %v454, %v454
        %v677 = vpack.c.bf16 %v497, %v497
        %v678 = vpack.c.bf16 %v540, %v540
        %v679 = vpack.c.bf16 %v583, %v583
        %v680 = vpack.c.bf16 %v626, %v626
        %v681 = vpack.c.bf16 %v669, %v669
        %v684 = vunpack.c.l.b16 %v293
        %v685 = vunpack.c.l.b16 %v294
        %v686 = vpack.c.b16 %v685, %v684
        %v688 = vsel %vm323, %v674, 0
        %v691 = vsel %vm323, %v686, 0
        %693 = vmatprep.subr.bf16.mxu0 0
        %694 = vmatpush1.bf16.xpose.msra.mxu0 %v691
        %695 = vmatprep.subr.bf16.mxu0 0
        %696 = vmatpush1.bf16.xpose.msra.mxu0 0
        %697 = vmatprep.subr.bf16.mxu0 0
        %698 = vmatpush1.bf16.xpose.msra.mxu0 0
        %699 = vmatprep.subr.bf16.mxu0 0
        %700 = vmatpush1.bf16.xpose.msra.mxu0 0
        %701 = vmatprep.subr.bf16.mxu0 0
        %702 = vmatpush1.bf16.xpose.msra.mxu0 0
        %703 = vmatprep.subr.bf16.mxu0 0
        %704 = vmatpush1.bf16.xpose.msra.mxu0 0
        %705 = vmatprep.subr.bf16.mxu0 0
        %706 = vmatpush1.bf16.xpose.msra.mxu0 0
        %707 = vmatprep.subr.bf16.mxu0 0
        %708 = vmatpush1.bf16.xpose.msra.mxu0 0
        %709 = vmatprep.subr.bf16.mxu0 0
        %710 = vmatpush1.bf16.xpose.msra.mxu0 0
        %711 = vmatprep.subr.bf16.mxu0 0
        %712 = vmatpush1.bf16.xpose.msra.mxu0 0
        %713 = vmatprep.subr.bf16.mxu0 0
        %714 = vmatpush1.bf16.xpose.msra.mxu0 0
        %715 = vmatprep.subr.bf16.mxu0 0
        %716 = vmatpush1.bf16.xpose.msra.mxu0 0
        %717 = vmatprep.subr.bf16.mxu0 0
        %718 = vmatpush1.bf16.xpose.msra.mxu0 0
        %719 = vmatprep.subr.bf16.mxu0 0
        %720 = vmatpush1.bf16.xpose.msra.mxu0 0
        %721 = vmatprep.subr.bf16.mxu0 0
        %722 = vmatpush1.bf16.xpose.msra.mxu0 0
        %723 = vmatprep.subr.bf16.mxu0 0
        %724 = vmatpush1.bf16.xpose.msra.mxu0 0
        %725 = vmatprep.mubr.bf16.mxu0 0
        %726 = vmatmul.mubr.bf16.gmra.mrb[0].mxu0 %v688
        %v727 = vpop.f32.mrb[0].mxu0
        %v728 = vadd.f32 0.0, %v727
        %v729 = vpop.f32.mrb[0].mxu0
        %v730 = vpop.f32.mrb[0].mxu0
        %v731 = vpop.f32.mrb[0].mxu0
        %732 = vdwg.mxu0
        %v735 = vunpack.c.l.b16 %v295
        %v736 = vunpack.c.l.b16 %v296
        %v737 = vpack.c.b16 %v736, %v735
        %v739 = vsel %vm323, %v675, 0
        %v742 = vsel %vm323, %v737, 0
        %744 = vmatprep.subr.bf16.mxu0 0
        %745 = vmatpush1.bf16.xpose.msra.mxu0 %v742
        %746 = vmatprep.subr.bf16.mxu0 0
        %747 = vmatpush1.bf16.xpose.msra.mxu0 0
        %748 = vmatprep.subr.bf16.mxu0 0
        %749 = vmatpush1.bf16.xpose.msra.mxu0 0
        %750 = vmatprep.subr.bf16.mxu0 0
        %751 = vmatpush1.bf16.xpose.msra.mxu0 0
        %752 = vmatprep.subr.bf16.mxu0 0
        %753 = vmatpush1.bf16.xpose.msra.mxu0 0
        %754 = vmatprep.subr.bf16.mxu0 0
        %755 = vmatpush1.bf16.xpose.msra.mxu0 0
        %756 = vmatprep.subr.bf16.mxu0 0
        %757 = vmatpush1.bf16.xpose.msra.mxu0 0
        %758 = vmatprep.subr.bf16.mxu0 0
        %759 = vmatpush1.bf16.xpose.msra.mxu0 0
        %760 = vmatprep.subr.bf16.mxu0 0
        %761 = vmatpush1.bf16.xpose.msra.mxu0 0
        %762 = vmatprep.subr.bf16.mxu0 0
        %763 = vmatpush1.bf16.xpose.msra.mxu0 0
        %764 = vmatprep.subr.bf16.mxu0 0
        %765 = vmatpush1.bf16.xpose.msra.mxu0 0
        %766 = vmatprep.subr.bf16.mxu0 0
        %767 = vmatpush1.bf16.xpose.msra.mxu0 0
        %768 = vmatprep.subr.bf16.mxu0 0
        %769 = vmatpush1.bf16.xpose.msra.mxu0 0
        %770 = vmatprep.subr.bf16.mxu0 0
        %771 = vmatpush1.bf16.xpose.msra.mxu0 0
        %772 = vmatprep.subr.bf16.mxu0 0
        %773 = vmatpush1.bf16.xpose.msra.mxu0 0
        %774 = vmatprep.subr.bf16.mxu0 0
        %775 = vmatpush1.bf16.xpose.msra.mxu0 0
        %776 = vmatprep.mubr.bf16.mxu0 0
        %777 = vmatmul.mubr.bf16.gmra.mrb[0].mxu0 %v739
        %v778 = vpop.f32.mrb[0].mxu0
        %v779 = vadd.f32 0.0, %v778
        %v780 = vpop.f32.mrb[0].mxu0
        %v781 = vpop.f32.mrb[0].mxu0
        %v782 = vpop.f32.mrb[0].mxu0
        %783 = vdwg.mxu0
        %v786 = vunpack.c.l.b16 %v297
        %v787 = vunpack.c.l.b16 %v298
        %v788 = vpack.c.b16 %v787, %v786
        %v790 = vsel %vm323, %v676, 0
        %v793 = vsel %vm323, %v788, 0
        %795 = vmatprep.subr.bf16.mxu0 0
        %796 = vmatpush1.bf16.xpose.msra.mxu0 %v793
        %797 = vmatprep.subr.bf16.mxu0 0
        %798 = vmatpush1.bf16.xpose.msra.mxu0 0
        %799 = vmatprep.subr.bf16.mxu0 0
        %800 = vmatpush1.bf16.xpose.msra.mxu0 0
        %801 = vmatprep.subr.bf16.mxu0 0
        %802 = vmatpush1.bf16.xpose.msra.mxu0 0
        %803 = vmatprep.subr.bf16.mxu0 0
        %804 = vmatpush1.bf16.xpose.msra.mxu0 0
        %805 = vmatprep.subr.bf16.mxu0 0
        %806 = vmatpush1.bf16.xpose.msra.mxu0 0
        %807 = vmatprep.subr.bf16.mxu0 0
        %808 = vmatpush1.bf16.xpose.msra.mxu0 0
        %809 = vmatprep.subr.bf16.mxu0 0
        %810 = vmatpush1.bf16.xpose.msra.mxu0 0
        %811 = vmatprep.subr.bf16.mxu0 0
        %812 = vmatpush1.bf16.xpose.msra.mxu0 0
        %813 = vmatprep.subr.bf16.mxu0 0
        %814 = vmatpush1.bf16.xpose.msra.mxu0 0
        %815 = vmatprep.subr.bf16.mxu0 0
        %816 = vmatpush1.bf16.xpose.msra.mxu0 0
        %817 = vmatprep.subr.bf16.mxu0 0
        %818 = vmatpush1.bf16.xpose.msra.mxu0 0
        %819 = vmatprep.subr.bf16.mxu0 0
        %820 = vmatpush1.bf16.xpose.msra.mxu0 0
        %821 = vmatprep.subr.bf16.mxu0 0
        %822 = vmatpush1.bf16.xpose.msra.mxu0 0
        %823 = vmatprep.subr.bf16.mxu0 0
        %824 = vmatpush1.bf16.xpose.msra.mxu0 0
        %825 = vmatprep.subr.bf16.mxu0 0
        %826 = vmatpush1.bf16.xpose.msra.mxu0 0
        %827 = vmatprep.mubr.bf16.mxu0 0
        %828 = vmatmul.mubr.bf16.gmra.mrb[0].mxu0 %v790
        %v829 = vpop.f32.mrb[0].mxu0
        %v830 = vadd.f32 0.0, %v829
        %v831 = vpop.f32.mrb[0].mxu0
        %v832 = vpop.f32.mrb[0].mxu0
        %v833 = vpop.f32.mrb[0].mxu0
        %834 = vdwg.mxu0
        %v837 = vunpack.c.l.b16 %v299
        %v838 = vunpack.c.l.b16 %v300
        %v839 = vpack.c.b16 %v838, %v837
        %v841 = vsel %vm323, %v677, 0
        %v844 = vsel %vm323, %v839, 0
        %846 = vmatprep.subr.bf16.mxu0 0
        %847 = vmatpush1.bf16.xpose.msra.mxu0 %v844
        %848 = vmatprep.subr.bf16.mxu0 0
        %849 = vmatpush1.bf16.xpose.msra.mxu0 0
        %850 = vmatprep.subr.bf16.mxu0 0
        %851 = vmatpush1.bf16.xpose.msra.mxu0 0
        %852 = vmatprep.subr.bf16.mxu0 0
        %853 = vmatpush1.bf16.xpose.msra.mxu0 0
        %854 = vmatprep.subr.bf16.mxu0 0
        %855 = vmatpush1.bf16.xpose.msra.mxu0 0
        %856 = vmatprep.subr.bf16.mxu0 0
        %857 = vmatpush1.bf16.xpose.msra.mxu0 0
        %858 = vmatprep.subr.bf16.mxu0 0
        %859 = vmatpush1.bf16.xpose.msra.mxu0 0
        %860 = vmatprep.subr.bf16.mxu0 0
        %861 = vmatpush1.bf16.xpose.msra.mxu0 0
        %862 = vmatprep.subr.bf16.mxu0 0
        %863 = vmatpush1.bf16.xpose.msra.mxu0 0
        %864 = vmatprep.subr.bf16.mxu0 0
        %865 = vmatpush1.bf16.xpose.msra.mxu0 0
        %866 = vmatprep.subr.bf16.mxu0 0
        %867 = vmatpush1.bf16.xpose.msra.mxu0 0
        %868 = vmatprep.subr.bf16.mxu0 0
        %869 = vmatpush1.bf16.xpose.msra.mxu0 0
        %870 = vmatprep.subr.bf16.mxu0 0
        %871 = vmatpush1.bf16.xpose.msra.mxu0 0
        %872 = vmatprep.subr.bf16.mxu0 0
        %873 = vmatpush1.bf16.xpose.msra.mxu0 0
        %874 = vmatprep.subr.bf16.mxu0 0
        %875 = vmatpush1.bf16.xpose.msra.mxu0 0
        %876 = vmatprep.subr.bf16.mxu0 0
        %877 = vmatpush1.bf16.xpose.msra.mxu0 0
        %878 = vmatprep.mubr.bf16.mxu0 0
        %879 = vmatmul.mubr.bf16.gmra.mrb[0].mxu0 %v841
        %v880 = vpop.f32.mrb[0].mxu0
        %v881 = vadd.f32 0.0, %v880
        %v882 = vpop.f32.mrb[0].mxu0
        %v883 = vpop.f32.mrb[0].mxu0
        %v884 = vpop.f32.mrb[0].mxu0
        %885 = vdwg.mxu0
        %v888 = vunpack.c.l.b16 %v301
        %v889 = vunpack.c.l.b16 %v302
        %v890 = vpack.c.b16 %v889, %v888
        %v892 = vsel %vm323, %v678, 0
        %v895 = vsel %vm323, %v890, 0
        %897 = vmatprep.subr.bf16.mxu0 0
        %898 = vmatpush1.bf16.xpose.msra.mxu0 %v895
        %899 = vmatprep.subr.bf16.mxu0 0
        %900 = vmatpush1.bf16.xpose.msra.mxu0 0
        %901 = vmatprep.subr.bf16.mxu0 0
        %902 = vmatpush1.bf16.xpose.msra.mxu0 0
        %903 = vmatprep.subr.bf16.mxu0 0
        %904 = vmatpush1.bf16.xpose.msra.mxu0 0
        %905 = vmatprep.subr.bf16.mxu0 0
        %906 = vmatpush1.bf16.xpose.msra.mxu0 0
        %907 = vmatprep.subr.bf16.mxu0 0
        %908 = vmatpush1.bf16.xpose.msra.mxu0 0
        %909 = vmatprep.subr.bf16.mxu0 0
        %910 = vmatpush1.bf16.xpose.msra.mxu0 0
        %911 = vmatprep.subr.bf16.mxu0 0
        %912 = vmatpush1.bf16.xpose.msra.mxu0 0
        %913 = vmatprep.subr.bf16.mxu0 0
        %914 = vmatpush1.bf16.xpose.msra.mxu0 0
        %915 = vmatprep.subr.bf16.mxu0 0
        %916 = vmatpush1.bf16.xpose.msra.mxu0 0
        %917 = vmatprep.subr.bf16.mxu0 0
        %918 = vmatpush1.bf16.xpose.msra.mxu0 0
        %919 = vmatprep.subr.bf16.mxu0 0
        %920 = vmatpush1.bf16.xpose.msra.mxu0 0
        %921 = vmatprep.subr.bf16.mxu0 0
        %922 = vmatpush1.bf16.xpose.msra.mxu0 0
        %923 = vmatprep.subr.bf16.mxu0 0
        %924 = vmatpush1.bf16.xpose.msra.mxu0 0
        %925 = vmatprep.subr.bf16.mxu0 0
        %926 = vmatpush1.bf16.xpose.msra.mxu0 0
        %927 = vmatprep.subr.bf16.mxu0 0
        %928 = vmatpush1.bf16.xpose.msra.mxu0 0
        %929 = vmatprep.mubr.bf16.mxu0 0
        %930 = vmatmul.mubr.bf16.gmra.mrb[0].mxu0 %v892
        %v931 = vpop.f32.mrb[0].mxu0
        %v932 = vadd.f32 0.0, %v931
        %v933 = vpop.f32.mrb[0].mxu0
        %v934 = vpop.f32.mrb[0].mxu0
        %v935 = vpop.f32.mrb[0].mxu0
        %936 = vdwg.mxu0
        %v939 = vunpack.c.l.b16 %v303
        %v940 = vunpack.c.l.b16 %v304
        %v941 = vpack.c.b16 %v940, %v939
        %v943 = vsel %vm323, %v679, 0
        %v946 = vsel %vm323, %v941, 0
        %948 = vmatprep.subr.bf16.mxu0 0
        %949 = vmatpush1.bf16.xpose.msra.mxu0 %v946
        %950 = vmatprep.subr.bf16.mxu0 0
        %951 = vmatpush1.bf16.xpose.msra.mxu0 0
        %952 = vmatprep.subr.bf16.mxu0 0
        %953 = vmatpush1.bf16.xpose.msra.mxu0 0
        %954 = vmatprep.subr.bf16.mxu0 0
        %955 = vmatpush1.bf16.xpose.msra.mxu0 0
        %956 = vmatprep.subr.bf16.mxu0 0
        %957 = vmatpush1.bf16.xpose.msra.mxu0 0
        %958 = vmatprep.subr.bf16.mxu0 0
        %959 = vmatpush1.bf16.xpose.msra.mxu0 0
        %960 = vmatprep.subr.bf16.mxu0 0
        %961 = vmatpush1.bf16.xpose.msra.mxu0 0
        %962 = vmatprep.subr.bf16.mxu0 0
        %963 = vmatpush1.bf16.xpose.msra.mxu0 0
        %964 = vmatprep.subr.bf16.mxu0 0
        %965 = vmatpush1.bf16.xpose.msra.mxu0 0
        %966 = vmatprep.subr.bf16.mxu0 0
        %967 = vmatpush1.bf16.xpose.msra.mxu0 0
        %968 = vmatprep.subr.bf16.mxu0 0
        %969 = vmatpush1.bf16.xpose.msra.mxu0 0
        %970 = vmatprep.subr.bf16.mxu0 0
        %971 = vmatpush1.bf16.xpose.msra.mxu0 0
        %972 = vmatprep.subr.bf16.mxu0 0
        %973 = vmatpush1.bf16.xpose.msra.mxu0 0
        %974 = vmatprep.subr.bf16.mxu0 0
        %975 = vmatpush1.bf16.xpose.msra.mxu0 0
        %976 = vmatprep.subr.bf16.mxu0 0
        %977 = vmatpush1.bf16.xpose.msra.mxu0 0
        %978 = vmatprep.subr.bf16.mxu0 0
        %979 = vmatpush1.bf16.xpose.msra.mxu0 0
        %980 = vmatprep.mubr.bf16.mxu0 0
        %981 = vmatmul.mubr.bf16.gmra.mrb[0].mxu0 %v943
        %v982 = vpop.f32.mrb[0].mxu0
        %v983 = vadd.f32 0.0, %v982
        %v984 = vpop.f32.mrb[0].mxu0
        %v985 = vpop.f32.mrb[0].mxu0
        %v986 = vpop.f32.mrb[0].mxu0
        %987 = vdwg.mxu0
        %v990 = vunpack.c.l.b16 %v305
        %v991 = vunpack.c.l.b16 %v306
        %v992 = vpack.c.b16 %v991, %v990
        %v994 = vsel %vm323, %v680, 0
        %v997 = vsel %vm323, %v992, 0
        %999 = vmatprep.subr.bf16.mxu0 0
        %1000 = vmatpush1.bf16.xpose.msra.mxu0 %v997
        %1001 = vmatprep.subr.bf16.mxu0 0
        %1002 = vmatpush1.bf16.xpose.msra.mxu0 0
        %1003 = vmatprep.subr.bf16.mxu0 0
        %1004 = vmatpush1.bf16.xpose.msra.mxu0 0
        %1005 = vmatprep.subr.bf16.mxu0 0
        %1006 = vmatpush1.bf16.xpose.msra.mxu0 0
        %1007 = vmatprep.subr.bf16.mxu0 0
        %1008 = vmatpush1.bf16.xpose.msra.mxu0 0
        %1009 = vmatprep.subr.bf16.mxu0 0
        %1010 = vmatpush1.bf16.xpose.msra.mxu0 0
        %1011 = vmatprep.subr.bf16.mxu0 0
        %1012 = vmatpush1.bf16.xpose.msra.mxu0 0
        %1013 = vmatprep.subr.bf16.mxu0 0
        %1014 = vmatpush1.bf16.xpose.msra.mxu0 0
        %1015 = vmatprep.subr.bf16.mxu0 0
        %1016 = vmatpush1.bf16.xpose.msra.mxu0 0
        %1017 = vmatprep.subr.bf16.mxu0 0
        %1018 = vmatpush1.bf16.xpose.msra.mxu0 0
        %1019 = vmatprep.subr.bf16.mxu0 0
        %1020 = vmatpush1.bf16.xpose.msra.mxu0 0
        %1021 = vmatprep.subr.bf16.mxu0 0
        %1022 = vmatpush1.bf16.xpose.msra.mxu0 0
        %1023 = vmatprep.subr.bf16.mxu0 0
        %1024 = vmatpush1.bf16.xpose.msra.mxu0 0
        %1025 = vmatprep.subr.bf16.mxu0 0
        %1026 = vmatpush1.bf16.xpose.msra.mxu0 0
        %1027 = vmatprep.subr.bf16.mxu0 0
        %1028 = vmatpush1.bf16.xpose.msra.mxu0 0
        %1029 = vmatprep.subr.bf16.mxu0 0
        %1030 = vmatpush1.bf16.xpose.msra.mxu0 0
        %1031 = vmatprep.mubr.bf16.mxu0 0
        %1032 = vmatmul.mubr.bf16.gmra.mrb[0].mxu0 %v994
        %v1033 = vpop.f32.mrb[0].mxu0
        %v1034 = vadd.f32 0.0, %v1033
        %v1035 = vpop.f32.mrb[0].mxu0
        %v1036 = vpop.f32.mrb[0].mxu0
        %v1037 = vpop.f32.mrb[0].mxu0
        %1038 = vdwg.mxu0
        %v1041 = vunpack.c.l.b16 %v307
        %v1042 = vunpack.c.l.b16 %v308
        %v1043 = vpack.c.b16 %v1042, %v1041
        %v1045 = vsel %vm323, %v681, 0
        %v1048 = vsel %vm323, %v1043, 0
        %1050 = vmatprep.subr.bf16.mxu0 0
        %1051 = vmatpush1.bf16.xpose.msra.mxu0 %v1048
        %1052 = vmatprep.subr.bf16.mxu0 0
        %1053 = vmatpush1.bf16.xpose.msra.mxu0 0
        %1054 = vmatprep.subr.bf16.mxu0 0
        %1055 = vmatpush1.bf16.xpose.msra.mxu0 0
        %1056 = vmatprep.subr.bf16.mxu0 0
        %1057 = vmatpush1.bf16.xpose.msra.mxu0 0
        %1058 = vmatprep.subr.bf16.mxu0 0
        %1059 = vmatpush1.bf16.xpose.msra.mxu0 0
        %1060 = vmatprep.subr.bf16.mxu0 0
        %1061 = vmatpush1.bf16.xpose.msra.mxu0 0
        %1062 = vmatprep.subr.bf16.mxu0 0
        %1063 = vmatpush1.bf16.xpose.msra.mxu0 0
        %1064 = vmatprep.subr.bf16.mxu0 0
        %1065 = vmatpush1.bf16.xpose.msra.mxu0 0
        %1066 = vmatprep.subr.bf16.mxu0 0
        %1067 = vmatpush1.bf16.xpose.msra.mxu0 0
        %1068 = vmatprep.subr.bf16.mxu0 0
        %1069 = vmatpush1.bf16.xpose.msra.mxu0 0
        %1070 = vmatprep.subr.bf16.mxu0 0
        %1071 = vmatpush1.bf16.xpose.msra.mxu0 0
        %1072 = vmatprep.subr.bf16.mxu0 0
        %1073 = vmatpush1.bf16.xpose.msra.mxu0 0
        %1074 = vmatprep.subr.bf16.mxu0 0
        %1075 = vmatpush1.bf16.xpose.msra.mxu0 0
        %1076 = vmatprep.subr.bf16.mxu0 0
        %1077 = vmatpush1.bf16.xpose.msra.mxu0 0
        %1078 = vmatprep.subr.bf16.mxu0 0
        %1079 = vmatpush1.bf16.xpose.msra.mxu0 0
        %1080 = vmatprep.subr.bf16.mxu0 0
        %1081 = vmatpush1.bf16.xpose.msra.mxu0 0
        %1082 = vmatprep.mubr.bf16.mxu0 0
        %1083 = vmatmul.mubr.bf16.gmra.mrb[0].mxu0 %v1045
        %v1084 = vpop.f32.mrb[0].mxu0
        %v1085 = vadd.f32 0.0, %v1084
        %v1086 = vpop.f32.mrb[0].mxu0
        %v1087 = vpop.f32.mrb[0].mxu0
        %v1088 = vpop.f32.mrb[0].mxu0
        %1089 = vdwg.mxu0
        %vm1090 = vcmask 130048
        %v1091 = vsel %vm1090, %v728, -inf
        %1092 = vmax.xlane.f32.xlu0 %v1091
        %v1093 = vpop.xlane.xlu0 %1092
        %v1094 = vsel %vm1090, %v779, -inf
        %1095 = vmax.xlane.f32.xlu0 %v1094
        %v1096 = vpop.xlane.xlu0 %1095
        %v1097 = vsel %vm1090, %v830, -inf
        %1098 = vmax.xlane.f32.xlu0 %v1097
        %v1099 = vpop.xlane.xlu0 %1098
        %v1100 = vsel %vm1090, %v881, -inf
        %1101 = vmax.xlane.f32.xlu0 %v1100
        %v1102 = vpop.xlane.xlu0 %1101
        %v1103 = vsel %vm1090, %v932, -inf
        %1104 = vmax.xlane.f32.xlu0 %v1103
        %v1105 = vpop.xlane.xlu0 %1104
        %v1106 = vsel %vm1090, %v983, -inf
        %1107 = vmax.xlane.f32.xlu0 %v1106
        %v1108 = vpop.xlane.xlu0 %1107
        %v1109 = vsel %vm1090, %v1034, -inf
        %1110 = vmax.xlane.f32.xlu0 %v1109
        %v1111 = vpop.xlane.xlu0 %1110
        %v1112 = vsel %vm1090, %v1085, -inf
        %1113 = vmax.xlane.f32.xlu0 %v1112
        %v1114 = vpop.xlane.xlu0 %1113
        %v1115 = vrot.slane %v1091, 4
        %v1116 = vmax.f32 %v1091, %v1115
        %v1117 = vrot.slane %v1116, 2
        %v1118 = vmax.f32 %v1116, %v1117
        %v1119 = vrot.slane %v1118, 1
        %v1120 = vmax.f32 %v1118, %v1119
        %v1121 = vrot.slane %v1094, 4
        %v1122 = vmax.f32 %v1094, %v1121
        %v1123 = vrot.slane %v1122, 2
        %v1124 = vmax.f32 %v1122, %v1123
        %v1125 = vrot.slane %v1124, 1
        %v1126 = vmax.f32 %v1124, %v1125
        %v1127 = vrot.slane %v1097, 4
        %v1128 = vmax.f32 %v1097, %v1127
        %v1129 = vrot.slane %v1128, 2
        %v1130 = vmax.f32 %v1128, %v1129
        %v1131 = vrot.slane %v1130, 1
        %v1132 = vmax.f32 %v1130, %v1131
        %v1133 = vrot.slane %v1100, 4
        %v1134 = vmax.f32 %v1100, %v1133
        %v1135 = vrot.slane %v1134, 2
        %v1136 = vmax.f32 %v1134, %v1135
        %v1137 = vrot.slane %v1136, 1
        %v1138 = vmax.f32 %v1136, %v1137
        %v1139 = vrot.slane %v1103, 4
        %v1140 = vmax.f32 %v1103, %v1139
        %v1141 = vrot.slane %v1140, 2
        %v1142 = vmax.f32 %v1140, %v1141
        %v1143 = vrot.slane %v1142, 1
        %v1144 = vmax.f32 %v1142, %v1143
        %v1145 = vrot.slane %v1106, 4
        %v1146 = vmax.f32 %v1106, %v1145
        %v1147 = vrot.slane %v1146, 2
        %v1148 = vmax.f32 %v1146, %v1147
        %v1149 = vrot.slane %v1148, 1
        %v1150 = vmax.f32 %v1148, %v1149
        %v1151 = vrot.slane %v1109, 4
        %v1152 = vmax.f32 %v1109, %v1151
        %v1153 = vrot.slane %v1152, 2
        %v1154 = vmax.f32 %v1152, %v1153
        %v1155 = vrot.slane %v1154, 1
        %v1156 = vmax.f32 %v1154, %v1155
        %v1157 = vrot.slane %v1112, 4
        %v1158 = vmax.f32 %v1112, %v1157
        %v1159 = vrot.slane %v1158, 2
        %v1160 = vmax.f32 %v1158, %v1159
        %v1161 = vrot.slane %v1160, 1
        %v1162 = vmax.f32 %v1160, %v1161
        %v1171 = vlaneseq
        %v1172 = vand.u32 %v1171, 127
        %v1173 = vlaneseq
        %v1174 = vshrl.u32 %v1173, 7
        %v1175 = vsub.s32 %v1172, %v1174
        %v1176 = vrot.slane %v1093, %v1175
        %v1177 = vlaneseq
        %v1178 = vshrl.u32 %v1177, 7
        %v1179 = vsub.s32 %v1172, %v1178
        %v1180 = vrot.slane %v1096, %v1179
        %v1181 = vlaneseq
        %v1182 = vshrl.u32 %v1181, 7
        %v1183 = vsub.s32 %v1172, %v1182
        %v1184 = vrot.slane %v1099, %v1183
        %v1185 = vlaneseq
        %v1186 = vshrl.u32 %v1185, 7
        %v1187 = vsub.s32 %v1172, %v1186
        %v1188 = vrot.slane %v1102, %v1187
        %v1189 = vlaneseq
        %v1190 = vshrl.u32 %v1189, 7
        %v1191 = vsub.s32 %v1172, %v1190
        %v1192 = vrot.slane %v1105, %v1191
        %v1193 = vlaneseq
        %v1194 = vshrl.u32 %v1193, 7
        %v1195 = vsub.s32 %v1172, %v1194
        %v1196 = vrot.slane %v1108, %v1195
        %v1197 = vlaneseq
        %v1198 = vshrl.u32 %v1197, 7
        %v1199 = vsub.s32 %v1172, %v1198
        %v1200 = vrot.slane %v1111, %v1199
        %v1201 = vlaneseq
        %v1202 = vshrl.u32 %v1201, 7
        %v1203 = vsub.s32 %v1172, %v1202
        %v1204 = vrot.slane %v1114, %v1203
        %vm1205 = vcmask 1041409
        %v1206 = vsel %vm1205, %v1180, %v1176
        %vm1207 = vcmask 1042434
        %v1208 = vsel %vm1207, %v1184, %v1206
        %vm1209 = vcmask 1043459
        %v1210 = vsel %vm1209, %v1188, %v1208
        %vm1211 = vcmask 1044484
        %v1212 = vsel %vm1211, %v1192, %v1210
        %vm1213 = vcmask 1045509
        %v1214 = vsel %vm1213, %v1196, %v1212
        %vm1215 = vcmask 1046534
        %v1216 = vsel %vm1215, %v1200, %v1214
        %vm1217 = vcmask 1047559
        %v1218 = vsel %vm1217, %v1204, %v1216
        %vm1220 = vcmask 64512
        %v1221 = vsel %vm1220, %v1218, -inf
        %1222 = vmax.xlane.f32.xlu0 %v1221
        %v1223 = vpop.xlane.xlu0 %1222
        %v1225 = vlaneseq
        %v1226 = vshrl.u32 %v1225, 7
        %v1227 = vsub.s32 0, %v1226
        %v1228 = vrot.slane %v1223, %v1227
        %v1229 = vlaneseq
        %v1230 = vshrl.u32 %v1229, 7
        %v1231 = vsub.s32 1, %v1230
        %v1232 = vrot.slane %v1223, %v1231
        %v1233 = vlaneseq
        %v1234 = vshrl.u32 %v1233, 7
        %v1235 = vsub.s32 2, %v1234
        %v1236 = vrot.slane %v1223, %v1235
        %v1237 = vlaneseq
        %v1238 = vshrl.u32 %v1237, 7
        %v1239 = vsub.s32 3, %v1238
        %v1240 = vrot.slane %v1223, %v1239
        %v1241 = vlaneseq
        %v1242 = vshrl.u32 %v1241, 7
        %v1243 = vsub.s32 4, %v1242
        %v1244 = vrot.slane %v1223, %v1243
        %v1245 = vlaneseq
        %v1246 = vshrl.u32 %v1245, 7
        %v1247 = vsub.s32 5, %v1246
        %v1248 = vrot.slane %v1223, %v1247
        %v1249 = vlaneseq
        %v1250 = vshrl.u32 %v1249, 7
        %v1251 = vsub.s32 6, %v1250
        %v1252 = vrot.slane %v1223, %v1251
        %v1253 = vlaneseq
        %v1254 = vshrl.u32 %v1253, 7
        %v1255 = vsub.s32 7, %v1254
        %v1256 = vrot.slane %v1223, %v1255
        %v1265 = vsub.f32 %v1093, %v1228
        %v1266 = vsub.f32 %v1096, %v1232
        %v1267 = vsub.f32 %v1099, %v1236
        %v1268 = vsub.f32 %v1102, %v1240
        %v1269 = vsub.f32 %v1105, %v1244
        %v1270 = vsub.f32 %v1108, %v1248
        %v1271 = vsub.f32 %v1111, %v1252
        %v1272 = vsub.f32 %v1114, %v1256
        %v1273 = vmul.f32 %v1265, 1.442695
        %v1274 = vpow.pop %v1273
        %v1275 = vmul.f32 %v1266, 1.442695
        %v1276 = vpow.pop %v1275
        %v1277 = vmul.f32 %v1267, 1.442695
        %v1278 = vpow.pop %v1277
        %v1279 = vmul.f32 %v1268, 1.442695
        %v1280 = vpow.pop %v1279
        %v1281 = vmul.f32 %v1269, 1.442695
        %v1282 = vpow.pop %v1281
        %v1283 = vmul.f32 %v1270, 1.442695
        %v1284 = vpow.pop %v1283
        %v1285 = vmul.f32 %v1271, 1.442695
        %v1286 = vpow.pop %v1285
        %v1287 = vmul.f32 %v1272, 1.442695
        %v1288 = vpow.pop %v1287
        %1297 = vset.pattern.permute.xlu0 0
        %1298 = vperm.xlu0 %1297, %v1274
        %v1299 = vpop.permute.xlu0 %1298
        %1300 = vset.pattern.permute.xlu0 0
        %1301 = vperm.xlu0 %1300, %v1276
        %v1302 = vpop.permute.xlu0 %1301
        %1303 = vset.pattern.permute.xlu0 0
        %1304 = vperm.xlu0 %1303, %v1278
        %v1305 = vpop.permute.xlu0 %1304
        %1306 = vset.pattern.permute.xlu0 0
        %1307 = vperm.xlu0 %1306, %v1280
        %v1308 = vpop.permute.xlu0 %1307
        %1309 = vset.pattern.permute.xlu0 0
        %1310 = vperm.xlu0 %1309, %v1282
        %v1311 = vpop.permute.xlu0 %1310
        %1312 = vset.pattern.permute.xlu0 0
        %1313 = vperm.xlu0 %1312, %v1284
        %v1314 = vpop.permute.xlu0 %1313
        %1315 = vset.pattern.permute.xlu0 0
        %1316 = vperm.xlu0 %1315, %v1286
        %v1317 = vpop.permute.xlu0 %1316
        %1318 = vset.pattern.permute.xlu0 0
        %1319 = vperm.xlu0 %1318, %v1288
        %v1320 = vpop.permute.xlu0 %1319
        %v1321 = vlaneseq
        %v1322 = vshrl.u32 %v1321, 7
        %v1323 = vsub.s32 %v1172, %v1322
        %v1324 = vrot.slane %v1299, %v1323
        %v1325 = vlaneseq
        %v1326 = vshrl.u32 %v1325, 7
        %v1327 = vsub.s32 %v1172, %v1326
        %v1328 = vrot.slane %v1302, %v1327
        %v1329 = vlaneseq
        %v1330 = vshrl.u32 %v1329, 7
        %v1331 = vsub.s32 %v1172, %v1330
        %v1332 = vrot.slane %v1305, %v1331
        %v1333 = vlaneseq
        %v1334 = vshrl.u32 %v1333, 7
        %v1335 = vsub.s32 %v1172, %v1334
        %v1336 = vrot.slane %v1308, %v1335
        %v1337 = vlaneseq
        %v1338 = vshrl.u32 %v1337, 7
        %v1339 = vsub.s32 %v1172, %v1338
        %v1340 = vrot.slane %v1311, %v1339
        %v1341 = vlaneseq
        %v1342 = vshrl.u32 %v1341, 7
        %v1343 = vsub.s32 %v1172, %v1342
        %v1344 = vrot.slane %v1314, %v1343
        %v1345 = vlaneseq
        %v1346 = vshrl.u32 %v1345, 7
        %v1347 = vsub.s32 %v1172, %v1346
        %v1348 = vrot.slane %v1317, %v1347
        %v1349 = vlaneseq
        %v1350 = vshrl.u32 %v1349, 7
        %v1351 = vsub.s32 %v1172, %v1350
        %v1352 = vrot.slane %v1320, %v1351
        %v1353 = vsel %vm1205, %v1328, %v1324
        %v1354 = vsel %vm1207, %v1332, %v1353
        %v1355 = vsel %vm1209, %v1336, %v1354
        %v1356 = vsel %vm1211, %v1340, %v1355
        %v1357 = vsel %vm1213, %v1344, %v1356
        %v1358 = vsel %vm1215, %v1348, %v1357
        %v1359 = vsel %vm1217, %v1352, %v1358
        %v1361 = vsel %vm1220, %v1359, 0.0
        %1362 = vadd.xlane.f32.xlu0 %v1361
        %v1363 = vpop.xlane.xlu0 %1362
        %v1365 = vlaneseq
        %v1366 = vshrl.u32 %v1365, 7
        %v1367 = vsub.s32 0, %v1366
        %v1368 = vrot.slane %v1363, %v1367
        %v1369 = vlaneseq
        %v1370 = vshrl.u32 %v1369, 7
        %v1371 = vsub.s32 1, %v1370
        %v1372 = vrot.slane %v1363, %v1371
        %v1373 = vlaneseq
        %v1374 = vshrl.u32 %v1373, 7
        %v1375 = vsub.s32 2, %v1374
        %v1376 = vrot.slane %v1363, %v1375
        %v1377 = vlaneseq
        %v1378 = vshrl.u32 %v1377, 7
        %v1379 = vsub.s32 3, %v1378
        %v1380 = vrot.slane %v1363, %v1379
        %v1381 = vlaneseq
        %v1382 = vshrl.u32 %v1381, 7
        %v1383 = vsub.s32 4, %v1382
        %v1384 = vrot.slane %v1363, %v1383
        %v1385 = vlaneseq
        %v1386 = vshrl.u32 %v1385, 7
        %v1387 = vsub.s32 5, %v1386
        %v1388 = vrot.slane %v1363, %v1387
        %v1389 = vlaneseq
        %v1390 = vshrl.u32 %v1389, 7
        %v1391 = vsub.s32 6, %v1390
        %v1392 = vrot.slane %v1363, %v1391
        %v1393 = vlaneseq
        %v1394 = vshrl.u32 %v1393, 7
        %v1395 = vsub.s32 7, %v1394
        %v1396 = vrot.slane %v1363, %v1395
        %v1405 = vrcp.pop %v1368
        %v1406 = vmul.f32 %v1274, %v1405
        %v1407 = vrcp.pop %v1372
        %v1408 = vmul.f32 %v1276, %v1407
        %v1409 = vrcp.pop %v1376
        %v1410 = vmul.f32 %v1278, %v1409
        %v1411 = vrcp.pop %v1380
        %v1412 = vmul.f32 %v1280, %v1411
        %v1413 = vrcp.pop %v1384
        %v1414 = vmul.f32 %v1282, %v1413
        %v1415 = vrcp.pop %v1388
        %v1416 = vmul.f32 %v1284, %v1415
        %v1417 = vrcp.pop %v1392
        %v1418 = vmul.f32 %v1286, %v1417
        %v1419 = vrcp.pop %v1396
        %v1420 = vmul.f32 %v1288, %v1419
        %1429 = vset.pattern.permute.xlu0 0
        %1430 = vperm.xlu0 %1429, %v1406
        %v1431 = vpop.permute.xlu0 %1430
        %1432 = vset.pattern.permute.xlu0 0
        %1433 = vperm.xlu0 %1432, %v1408
        %v1434 = vpop.permute.xlu0 %1433
        %1435 = vset.pattern.permute.xlu0 0
        %1436 = vperm.xlu0 %1435, %v1410
        %v1437 = vpop.permute.xlu0 %1436
        %1438 = vset.pattern.permute.xlu0 0
        %1439 = vperm.xlu0 %1438, %v1412
        %v1440 = vpop.permute.xlu0 %1439
        %1441 = vset.pattern.permute.xlu0 0
        %1442 = vperm.xlu0 %1441, %v1414
        %v1443 = vpop.permute.xlu0 %1442
        %1444 = vset.pattern.permute.xlu0 0
        %1445 = vperm.xlu0 %1444, %v1416
        %v1446 = vpop.permute.xlu0 %1445
        %1447 = vset.pattern.permute.xlu0 0
        %1448 = vperm.xlu0 %1447, %v1418
        %v1449 = vpop.permute.xlu0 %1448
        %1450 = vset.pattern.permute.xlu0 0
        %1451 = vperm.xlu0 %1450, %v1420
        %v1452 = vpop.permute.xlu0 %1451
        %v1453 = vlaneseq
        %v1454 = vshrl.u32 %v1453, 7
        %v1455 = vsub.s32 %v1172, %v1454
        %v1456 = vrot.slane %v1431, %v1455
        %v1457 = vlaneseq
        %v1458 = vshrl.u32 %v1457, 7
        %v1459 = vsub.s32 %v1172, %v1458
        %v1460 = vrot.slane %v1434, %v1459
        %v1461 = vlaneseq
        %v1462 = vshrl.u32 %v1461, 7
        %v1463 = vsub.s32 %v1172, %v1462
        %v1464 = vrot.slane %v1437, %v1463
        %v1465 = vlaneseq
        %v1466 = vshrl.u32 %v1465, 7
        %v1467 = vsub.s32 %v1172, %v1466
        %v1468 = vrot.slane %v1440, %v1467
        %v1469 = vlaneseq
        %v1470 = vshrl.u32 %v1469, 7
        %v1471 = vsub.s32 %v1172, %v1470
        %v1472 = vrot.slane %v1443, %v1471
        %v1473 = vlaneseq
        %v1474 = vshrl.u32 %v1473, 7
        %v1475 = vsub.s32 %v1172, %v1474
        %v1476 = vrot.slane %v1446, %v1475
        %v1477 = vlaneseq
        %v1478 = vshrl.u32 %v1477, 7
        %v1479 = vsub.s32 %v1172, %v1478
        %v1480 = vrot.slane %v1449, %v1479
        %v1481 = vlaneseq
        %v1482 = vshrl.u32 %v1481, 7
        %v1483 = vsub.s32 %v1172, %v1482
        %v1484 = vrot.slane %v1452, %v1483
        %v1485 = vsel %vm1205, %v1460, %v1456
        %v1486 = vsel %vm1207, %v1464, %v1485
        %v1487 = vsel %vm1209, %v1468, %v1486
        %v1488 = vsel %vm1211, %v1472, %v1487
        %v1489 = vsel %vm1213, %v1476, %v1488
        %v1490 = vsel %vm1215, %v1480, %v1489
        %v1491 = vsel %vm1217, %v1484, %v1490
        %1493 = vst.msk [vmem:[%s283] sm:$0xff] %vm1220, %v1491
        %v1502 = vsel %vm1205, %v1126, %v1120
        %v1503 = vsel %vm1207, %v1132, %v1502
        %v1504 = vsel %vm1209, %v1138, %v1503
        %v1505 = vsel %vm1211, %v1144, %v1504
        %v1506 = vsel %vm1213, %v1150, %v1505
        %v1507 = vsel %vm1215, %v1156, %v1506
        %v1508 = vsel %vm1217, %v1162, %v1507
        %v1510 = vsel %vm1090, %v1508, -inf
        %1511 = vmax.xlane.f32.xlu0 %v1510
        %v1512 = vpop.xlane.xlu0 %1511
        %v1514 = vrot.slane %v1512, 1
        %v1515 = vrot.slane %v1512, 2
        %v1516 = vrot.slane %v1512, 3
        %v1517 = vrot.slane %v1512, 4
        %v1518 = vrot.slane %v1512, 5
        %v1519 = vrot.slane %v1512, 6
        %v1520 = vrot.slane %v1512, 7
        %v1529 = vsub.f32 %v1120, %v1512
        %v1530 = vsub.f32 %v1126, %v1514
        %v1531 = vsub.f32 %v1132, %v1515
        %v1532 = vsub.f32 %v1138, %v1516
        %v1533 = vsub.f32 %v1144, %v1517
        %v1534 = vsub.f32 %v1150, %v1518
        %v1535 = vsub.f32 %v1156, %v1519
        %v1536 = vsub.f32 %v1162, %v1520
        %v1537 = vmul.f32 %v1529, 1.442695
        %v1538 = vpow.pop %v1537
        %v1539 = vmul.f32 %v1530, 1.442695
        %v1540 = vpow.pop %v1539
        %v1541 = vmul.f32 %v1531, 1.442695
        %v1542 = vpow.pop %v1541
        %v1543 = vmul.f32 %v1532, 1.442695
        %v1544 = vpow.pop %v1543
        %v1545 = vmul.f32 %v1533, 1.442695
        %v1546 = vpow.pop %v1545
        %v1547 = vmul.f32 %v1534, 1.442695
        %v1548 = vpow.pop %v1547
        %v1549 = vmul.f32 %v1535, 1.442695
        %v1550 = vpow.pop %v1549
        %v1551 = vmul.f32 %v1536, 1.442695
        %v1552 = vpow.pop %v1551
        %v1561 = vrot.slane %v1540, 7
        %v1562 = vsel %vm1205, %v1561, %v1538
        %v1563 = vrot.slane %v1542, 6
        %v1564 = vsel %vm1207, %v1563, %v1562
        %v1565 = vrot.slane %v1544, 5
        %v1566 = vsel %vm1209, %v1565, %v1564
        %v1567 = vrot.slane %v1546, 4
        %v1568 = vsel %vm1211, %v1567, %v1566
        %v1569 = vrot.slane %v1548, 3
        %v1570 = vsel %vm1213, %v1569, %v1568
        %v1571 = vrot.slane %v1550, 2
        %v1572 = vsel %vm1215, %v1571, %v1570
        %v1573 = vrot.slane %v1552, 1
        %v1574 = vsel %vm1217, %v1573, %v1572
        %v1576 = vsel %vm1090, %v1574, 0.0
        %1577 = vadd.xlane.f32.xlu0 %v1576
        %v1578 = vpop.xlane.xlu0 %1577
        %v1580 = vrot.slane %v1578, 1
        %v1581 = vrot.slane %v1578, 2
        %v1582 = vrot.slane %v1578, 3
        %v1583 = vrot.slane %v1578, 4
        %v1584 = vrot.slane %v1578, 5
        %v1585 = vrot.slane %v1578, 6
        %v1586 = vrot.slane %v1578, 7
        %v1595 = vrcp.pop %v1578
        %v1596 = vmul.f32 %v1538, %v1595
        %v1597 = vrcp.pop %v1580
        %v1598 = vmul.f32 %v1540, %v1597
        %v1599 = vrcp.pop %v1581
        %v1600 = vmul.f32 %v1542, %v1599
        %v1601 = vrcp.pop %v1582
        %v1602 = vmul.f32 %v1544, %v1601
        %v1603 = vrcp.pop %v1583
        %v1604 = vmul.f32 %v1546, %v1603
        %v1605 = vrcp.pop %v1584
        %v1606 = vmul.f32 %v1548, %v1605
        %v1607 = vrcp.pop %v1585
        %v1608 = vmul.f32 %v1550, %v1607
        %v1609 = vrcp.pop %v1586
        %v1610 = vmul.f32 %v1552, %v1609
        %v1619 = vrot.slane %v1598, 7
        %v1620 = vsel %vm1205, %v1619, %v1596
        %v1621 = vrot.slane %v1600, 6
        %v1622 = vsel %vm1207, %v1621, %v1620
        %v1623 = vrot.slane %v1602, 5
        %v1624 = vsel %vm1209, %v1623, %v1622
        %v1625 = vrot.slane %v1604, 4
        %v1626 = vsel %vm1211, %v1625, %v1624
        %v1627 = vrot.slane %v1606, 3
        %v1628 = vsel %vm1213, %v1627, %v1626
        %v1629 = vrot.slane %v1608, 2
        %v1630 = vsel %vm1215, %v1629, %v1628
        %v1631 = vrot.slane %v1610, 1
        %v1632 = vsel %vm1217, %v1631, %v1630
        %1634 = vst.msk [vmem:[%s277] sm:$0xff] %vm1090, %v1632
        %p1635 = scmp.lt.s32.totalorder %s25, 1
        %s1636 = scalar_select %p1635, %s25, 1
        %s1637 = smul.addr %s1636, 8
        %s1638 = scalar_lea.vmem %s3, %s1637
        %s1639 = sand.u32 %s132, 1
        %s1640 = scalar_lea.sflag [#allocation4], %s1639
        %s1641 = sand.u32 %s132, 1
        %s1642 = smul.addr %s1641, 8
        %s1643 = scalar_lea.vmem [#allocation8], %s1642
        // Predicated region
        $region45: #{tpu_custom_call.1} parent=31 // pred_check
          %p1644 = pneg %p116
        $region46: #{tpu_custom_call.1} parent=31 // pred_check_branch
          %1646 = sbr.rel (%p1644) target = $region48
        $region47: #{tpu_custom_call.1} parent=31 // pred_region
          _
        $region48: #{tpu_custom_call.1} parent=31 // pred_fallthru
          _
        // Predicated region
        $region49: #{tpu_custom_call.1} parent=31 // pred_check
          %p1647 = pneg %p142
        $region50: #{tpu_custom_call.1} parent=31 // pred_check_branch
          %1649 = sbr.rel (%p1647) target = $region52
        $region51: #{tpu_custom_call.1} parent=31 // pred_region
          %s1651 = ssub.s32 128, 128
          %1652 = vsyncadd %s1640, %s1651
          %s1653 = smul.addr %s25, 128
          %s1654 = scalar_lea.hbm %s4, %s1653
          %s1656 = sshll.u32 %s1643, 4
          %s1657 = int_to_ptr.vmem [resolvable:$true] %s1656
          %1659 = dma.vmem_to_hbm [thread:$0]  %s1657, 128, %s1654, %s1640
        $region52: #{tpu_custom_call.1} parent=31 // pred_fallthru
          _
      $region32: #{tpu_custom_call.1} parent=5 // pred_fallthru
        _
      %p1660 = scmp.le.s32.totalorder 2, %s20
      // Predicated region
      $region53: #{tpu_custom_call.1} parent=5 // pred_check
        %p1661 = pneg %p1660
      $region54: #{tpu_custom_call.1} parent=5 // pred_check_branch
        %1663 = sbr.rel (%p1661) target = $region56
      $region55: #{tpu_custom_call.1} parent=5 // pred_region
        %s1664 = ssub.s32 %s20, 2
        // Predicated region
        $region57: #{tpu_custom_call.1} parent=55 // pred_check
          %p1665 = pneg %p122
        $region58: #{tpu_custom_call.1} parent=55 // pred_check_branch
          %1667 = sbr.rel (%p1665) target = $region60
        $region59: #{tpu_custom_call.1} parent=55 // pred_region
          %p1668 = scmp.lt.s32.totalorder %s26, 1
          %s1669 = scalar_select %p1668, %s26, 1
          %s1670 = smul.addr %s1669, 8
          %s1671 = scalar_lea.vmem %s3, %s1670
        $region60: #{tpu_custom_call.1} parent=55 // pred_fallthru
          _
        // Predicated region
        $region61: #{tpu_custom_call.1} parent=55 // pred_check
          %p1672 = pneg %p148
        $region62: #{tpu_custom_call.1} parent=55 // pred_check_branch
          %1674 = sbr.rel (%p1672) target = $region64
        $region63: #{tpu_custom_call.1} parent=55 // pred_region
          %s1675 = sand.u32 %s133, 1
          %s1676 = scalar_lea.sflag [#allocation4], %s1675
          %s1677 = sand.u32 %s133, 1
          %s1678 = smul.addr %s1677, 8
          %s1679 = scalar_lea.vmem [#allocation8], %s1678
          %1680 = dma.done %s1676, 128
        $region64: #{tpu_custom_call.1} parent=55 // pred_fallthru
          _
      $region56: #{tpu_custom_call.1} parent=5 // pred_fallthru
        _
    $region6: #{tpu_custom_call.1} parent=1 // loop_footer
      %s24 = sadd.s32 1, %s20
    $region7: #{tpu_custom_call.1} parent=1 // loop_footer_branch
      %19 = sbr.rel target = $region3
    $region8: #{tpu_custom_call.1} parent=1 // loop_exit
      _
    %1681 = vsyncpa [#allocation3], 1
    %s1682 = scalar_lea.sflag [#allocation3], 1
    %1683 = vsyncpa %s1682, 1
    %1684 = vsyncpa [#allocation6], 1
    %s1685 = scalar_lea.sflag [#allocation6], 1
    %1686 = vsyncpa %s1685, 1
    %1687 = vsyncpa [#allocation4], 1
    %s1688 = scalar_lea.sflag [#allocation4], 1
    %1689 = vsyncpa %s1688, 1

</llo_original>
